<compile_context>
chip_gen: v7x
topology: tpu7x:2x2x1
jax: 0.10.0
libtpu: 0.0.40
codegen_flags: <defaults>
</compile_context>

<pallas_src>
import functools
import math

import jax
import jax.numpy as jnp
from jax.experimental import pallas as pl
from jax.experimental.pallas import tpu as pltpu

# Module default: prior_sig = 0.1 ** 2 is passed directly to KLD_cost as the prior
# *sigma* (sig_p) in the PyTorch code, so we mirror that exactly.
PRIOR_SIG = 0.1 ** 2
BIAS_PRIOR_SIG = 0.1       # bias prior sigma (hard-coded in the module forward)


def _softplus(x):
    # F.softplus(x, beta=1, threshold=20): linear above threshold, log1p(exp(x)) below.
    return jnp.where(x > 20.0, x, jnp.log1p(jnp.exp(x)))


def _round_up(a, b):
    return (a + b - 1) // b * b


def _pick_tile(dim, align, cap):
    """Largest multiple of `align` <= cap dividing round_up(dim, align), to avoid
    wrapper-side pad copies; falls back to `cap` (accept padding) rather than a
    pathologically small tile."""
    dp = _round_up(dim, align)
    hi = max(align, (min(cap, dp) // align) * align)
    for cand in range(hi, 0, -align):
        if dp % cand == 0:
            if 2 * cand >= hi:
                return cand
            break
    return hi


def _pad2(a, rows, cols, value=0.0):
    r, c = a.shape
    if r == rows and c == cols:
        return a
    return jnp.pad(a, ((0, rows - r), (0, cols - c)), constant_values=value)


def _vmem_limit(in_bytes_per_step, out_bytes_per_step, scratch_bytes):
    est = 2 * (in_bytes_per_step + out_bytes_per_step) + scratch_bytes
    # 2x headroom; clamp between 32 MiB (above v5e's 16 MiB default scoped limit)
    # and 56 MiB (headroom under v7x's 64 MiB physical VMEM).
    return int(min(max(2 * est, 32 << 20), 56 << 20))


# --------------------------------------------------------------------------------------
# Kernels
# --------------------------------------------------------------------------------------
def _sample_kernel(x_ref, wmu_ref, sig2_ref, epsw_ref, actb_ref,
                   out_ref, kld_ref, mu_acc, var_acc,
                   *, inv_prior2, kld_const):
    i = pl.program_id(0)
    k = pl.program_id(2)
    nk = pl.num_programs(2)

    @pl.when(k == 0)
    def _init():
        mu_acc[...] = jnp.zeros_like(mu_acc)
        var_acc[...] = jnp.zeros_like(var_acc)
        kld_ref[...] = jnp.zeros_like(kld_ref)

    x = x_ref[...]            # (tm, tk) f32
    w_mu = wmu_ref[...]       # (tk, tn) bf16 or f32
    sig2 = sig2_ref[...]      # (tk, tn) same dtype == (1e-6 + softplus(W_p))**2

    # act_mu += X @ W_mu ; act_var += X^2 @ sig2_w   (bf16 MXU passes, f32 accumulate)
    mu_acc[...] += jnp.dot(x.astype(w_mu.dtype), w_mu,
                           preferred_element_type=jnp.float32)
    var_acc[...] += jnp.dot((x * x).astype(sig2.dtype), sig2,
                            preferred_element_type=jnp.float32)

    # Closed-form KL(q(w)||N(0, prior^2)) for this weight tile, computed once
    # (first M-tile only) while the tile is already resident in VMEM (log -> EUP slot,
    # free filler in the mem-bound regime).  Padded entries contribute ~zero because
    # sig2 is padded with PRIOR_SIG**2 and W_mu with 0.  Final 0.5 applied in wrapper.
    @pl.when(i == 0)
    def _kld():
        w_f = w_mu.astype(jnp.float32)
        s_f = sig2.astype(jnp.float32)
        elem = inv_prior2 * (s_f + w_f * w_f) - jnp.log(s_f) + kld_const
        tkb, tnb = elem.shape
        kld_ref[...] += jnp.sum(elem.reshape(tkb // 8, 8, tnb), axis=0)

    @pl.when(k == nk - 1)
    def _finalize():
        out = (mu_acc[...]
               + jnp.sqrt(var_acc[...]) * epsw_ref[...].astype(jnp.float32)
               + actb_ref[...])
        out_ref[...] = out.astype(out_ref.dtype)


def _eval_kernel(x_ref, wmu_ref, bmu_ref, out_ref, acc):
    k = pl.program_id(2)

    @pl.when(k == 0)
    def _init():
        acc[...] = jnp.zeros_like(acc)

    acc[...] += jnp.dot(x_ref[...].astype(wmu_ref.dtype), wmu_ref[...],
                        preferred_element_type=jnp.float32)

    @pl.when(k == pl.num_programs(2) - 1)
    def _finalize():
        out_ref[...] = (acc[...] + bmu_ref[...]).astype(out_ref.dtype)


# --------------------------------------------------------------------------------------
# Wrapper
# --------------------------------------------------------------------------------------
def bayes_linear_localreparam(x, W_mu, W_p, b_mu, b_p, eps_W, eps_b,
                              *, training=True, sample=False,
                              weight_dtype=jnp.bfloat16,
                              tm=None, tn=None, tk=None):
    """Forward of BayesLinear_localreparam. Returns (output, kld, 0)."""
    x = jnp.asarray(x, jnp.float32)
    B, n_in = x.shape
    n_out = W_mu.shape[1]

    wdtype = jnp.dtype(weight_dtype)
    wbytes = wdtype.itemsize
    m_align = 16 if wbytes < 4 else 8     # bf16 blocks want 16-row sublane alignment

    auto_tn = tn is None
    tm = tm if tm is not None else _pick_tile(B, m_align, 256)
    tn = tn if tn is not None else _pick_tile(n_out, 128, 512)
    tk = tk if tk is not None else _pick_tile(n_in, 128, 1024)
    assert tm % 8 == 0 and tn % 128 == 0 and tk % 128 == 0

    # v7x megacore: guarantee >=2 blocks on a "parallel" axis so both TensorCores
    # get work (only when auto-tiling; prefer a divisor of padded N to avoid padding).
    if auto_tn and (_round_up(B, tm) // tm) * (_round_up(n_out, tn) // tn) < 2:
        np_ = _round_up(n_out, 128)
        if np_ // 128 >= 2:
            for cand in range(tn - 128, 0, -128):
                if np_ % cand == 0 and np_ // cand >= 2:
                    tn = cand
                    break

    M = _round_up(B, tm)
    N = _round_up(n_out, tn)
    K = _round_up(n_in, tk)
    grid = (M // tm, N // tn, K // tk)

    x_p = _pad2(x, M, K)
    wmu_p = _pad2(W_mu.astype(wdtype), K, N)

    if (not training) and (not sample):
        bmu_p = jnp.pad(b_mu.astype(jnp.float32), (0, N - n_out)).reshape(1, N)
        cparams = pltpu.CompilerParams(
            dimension_semantics=("parallel", "parallel", "arbitrary"),
            vmem_limit_bytes=_vmem_limit(
                tm * tk * 4 + tk * tn * wbytes + tn * 4,   # inputs / step
                tm * tn * 4,                               # output / step
                tm * tn * 4))                              # accumulator scratch
        out = pl.pallas_call(
            _eval_kernel,
            out_shape=jax.ShapeDtypeStruct((M, N), jnp.float32),
            grid_spec=pltpu.PrefetchScalarGridSpec(
                num_scalar_prefetch=0,
                grid=grid,
                in_specs=[
                    pl.BlockSpec((tm, tk), lambda i, j, k: (i, k)),   # X
                    pl.BlockSpec((tk, tn), lambda i, j, k: (k, j)),   # W_mu
                    pl.BlockSpec((1, tn), lambda i, j, k: (0, j)),    # b_mu
                ],
                out_specs=pl.BlockSpec((tm, tn), lambda i, j, k: (i, j)),
                scratch_shapes=[pltpu.VMEM((tm, tn), jnp.float32)],
            ),
            compiler_params=cparams,
        )(x_p, wmu_p, bmu_p)
        return out[:B, :n_out], jnp.float32(0.0), 0

    # ---------------- sampling / training path ----------------
    # Weight-sized elementwise work done exactly once (not once per M-tile); the
    # softplus -> square -> cast -> pad chain fuses into a single pass over W_p.
    std_w = 1e-6 + _softplus(W_p.astype(jnp.float32))
    std_b = 1e-6 + _softplus(b_p.astype(jnp.float32))
    act_b = b_mu.astype(jnp.float32) + std_b * eps_b.astype(jnp.float32)     # (n_out,)

    neutral = float(PRIOR_SIG * PRIOR_SIG)   # sig2 padding value => ~zero KLD contribution
    sig2_p = _pad2((std_w * std_w).astype(wdtype), K, N, value=neutral)
    epsw_p = _pad2(eps_W.astype(wdtype), M, N)
    actb_p = jnp.pad(act_b, (0, N - n_out)).reshape(1, N)

    kernel = functools.partial(
        _sample_kernel,
        inv_prior2=float(1.0 / (PRIOR_SIG * PRIOR_SIG)),
        kld_const=float(2.0 * math.log(PRIOR_SIG) - 1.0),
    )

    in_bytes = tm * tk * 4 + 2 * tk * tn * wbytes + tm * tn * wbytes + tn * 4
    out_bytes = tm * tn * 4 + 8 * tn * 4
    scratch_bytes = 2 * tm * tn * 4 + tk * tn * 4   # accumulators + KLD f32 intermediate
    cparams = pltpu.CompilerParams(
        dimension_semantics=("parallel", "parallel", "arbitrary"),
        vmem_limit_bytes=_vmem_limit(in_bytes, out_bytes, scratch_bytes))

    out, kld_partial = pl.pallas_call(
        kernel,
        out_shape=(jax.ShapeDtypeStruct((M, N), jnp.float32),
                   jax.ShapeDtypeStruct((grid[0] * 8, N), jnp.float32)),
        grid_spec=pltpu.PrefetchScalarGridSpec(
            num_scalar_prefetch=0,
            grid=grid,
            in_specs=[
                pl.BlockSpec((tm, tk), lambda i, j, k: (i, k)),   # X (f32)
                pl.BlockSpec((tk, tn), lambda i, j, k: (k, j)),   # W_mu (wdtype)
                pl.BlockSpec((tk, tn), lambda i, j, k: (k, j)),   # sig2_w (wdtype)
                pl.BlockSpec((tm, tn), lambda i, j, k: (i, j)),   # eps_W (wdtype)
                pl.BlockSpec((1, tn), lambda i, j, k: (0, j)),    # act_b = b_mu+std_b*eps_b
            ],
            out_specs=(
                pl.BlockSpec((tm, tn), lambda i, j, k: (i, j)),   # output
                # KLD partials kept (i, j)-indexed so the i axis stays safe under
                # "parallel" megacore sharding; the i>0 zero-block writeback costs
                # <= 8/tm of the output-plane writes (negligible at default tm).
                pl.BlockSpec((8, tn), lambda i, j, k: (i, j)),
            ),
            scratch_shapes=[pltpu.VMEM((tm, tn), jnp.float32),    # act_mu accumulator
                            pltpu.VMEM((tm, tn), jnp.float32)],   # act_var accumulator
        ),
        compiler_params=cparams,
    )(x_p, wmu_p, sig2_p, epsw_p, actb_p)

    # Tiny finishing work in plain XLA: reduce the (8*Mi, N) partials and add bias KLD.
    kld_w = 0.5 * jnp.sum(kld_partial)
    kld_b = 0.5 * jnp.sum(2.0 * jnp.log(BIAS_PRIOR_SIG / std_b) - 1.0
                          + (std_b / BIAS_PRIOR_SIG) ** 2
                          + (b_mu.astype(jnp.float32) / BIAS_PRIOR_SIG) ** 2)
    return out[:B, :n_out], kld_w + kld_b, 0


# --------------------------------------------------------------------------------------
# Pure-JAX reference (mirrors the PyTorch forward exactly, f32 everywhere)
# --------------------------------------------------------------------------------------
def _reference(x, W_mu, W_p, b_mu, b_p, eps_W, eps_b):
    std_w = 1e-6 + _softplus(W_p)
    std_b = 1e-6 + _softplus(b_p)
    act_mu = x @ W_mu
    act_std = jnp.sqrt((x * x) @ (std_w * std_w))
    out = act_mu + act_std * eps_W + (b_mu + std_b * eps_b)[None, :]
    kld_w = 0.5 * jnp.sum(2.0 * jnp.log(PRIOR_SIG / std_w) - 1.0
                          + (std_w / PRIOR_SIG) ** 2 + (W_mu / PRIOR_SIG) ** 2)
    kld_b = 0.5 * jnp.sum(2.0 * jnp.log(BIAS_PRIOR_SIG / std_b) - 1.0
                          + (std_b / BIAS_PRIOR_SIG) ** 2 + (b_mu / BIAS_PRIOR_SIG) ** 2)
    return out, kld_w + kld_b


if __name__ == "__main__":
    B, n_in, n_out = 24, 256, 384
    key = jax.random.PRNGKey(0)
    k_wmu, k_wp, k_bmu, k_bp, k_x, k_ew, k_eb = jax.random.split(key, 7)

    # Parameter init mirroring the module __init__ (xavier_uniform W_mu, U(-6,-5) rhos).
    xav = (6.0 / (n_in + n_out)) ** 0.5
    W_mu = jax.random.uniform(k_wmu, (n_in, n_out), jnp.float32, -xav, xav)
    W_p = jax.random.uniform(k_wp, (n_in, n_out), jnp.float32, -6.0, -5.0)
    b_mu = jax.random.uniform(k_bmu, (n_out,), jnp.float32, -1e-8, 1e-8)
    b_p = jax.random.uniform(k_bp, (n_out,), jnp.float32, -6.0, -5.0)

    x = jax.random.normal(k_x, (B, n_in), jnp.float32)
    # Noise drawn outside the kernel so the path is deterministic & checkable.
    eps_W = jax.random.normal(k_ew, (B, n_out), jnp.float32)
    eps_b = jax.random.normal(k_eb, (n_out,), jnp.float32)

    out_ref, kld_ref = _reference(x, W_mu, W_p, b_mu, b_p, eps_W, eps_b)

    # 1) default (production) path: bf16 weight streaming, auto tiles.
    out, kld, _ = bayes_linear_localreparam(x, W_mu, W_p, b_mu, b_p, eps_W, eps_b,
                                            training=True, sample=True)
    out = jax.block_until_ready(out)
    kld = jax.block_until_ready(kld)
    assert jnp.allclose(out, out_ref, rtol=3e-2, atol=3e-2), "output mismatch (bf16 default)"
    assert jnp.allclose(kld, kld_ref, rtol=5e-3), "kld mismatch (bf16 default)"

    # 2) f32 weight streaming: tight structural check against the f32 reference.
    out32, kld32, _ = bayes_linear_localreparam(x, W_mu, W_p, b_mu, b_p, eps_W, eps_b,
                                                training=True, sample=True,
                                                weight_dtype=jnp.float32)
    out32 = jax.block_until_ready(out32)
    kld32 = jax.block_until_ready(kld32)
    assert jnp.allclose(out32, out_ref, rtol=1e-4, atol=1e-4), "output mismatch (f32 path)"
    assert jnp.allclose(kld32, kld_ref, rtol=5e-4), "kld mismatch (f32 path)"

    # 3) small tiles to exercise a genuinely multi-tile (i, j, k) grid.
    out2, kld2, _ = bayes_linear_localreparam(x, W_mu, W_p, b_mu, b_p, eps_W, eps_b,
                                              training=True, sample=True,
                                              weight_dtype=jnp.float32,
                                              tm=16, tn=128, tk=128)
    out2 = jax.block_until_ready(out2)
    kld2 = jax.block_until_ready(kld2)
    assert jnp.allclose(out2, out_ref, rtol=1e-4, atol=1e-4), "output mismatch (small tiles)"
    assert jnp.allclose(kld2, kld_ref, rtol=5e-4), "kld mismatch (small tiles)"

    # 4) deterministic (eval, no-sample) path with default bf16 weights.
    out_det, kld0, _ = bayes_linear_localreparam(x, W_mu, W_p, b_mu, b_p, eps_W, eps_b,
                                                 training=False, sample=False)
    out_det = jax.block_until_ready(out_det)
    assert jnp.allclose(out_det, x @ W_mu + b_mu[None, :], rtol=2e-2, atol=2e-2), \
        "output mismatch (eval path)"

    print("KERNEL_OK")
</pallas_src>

<mosaic_0001>
module attributes {stable_mosaic.version = 11 : i64} {
  func.func @_sample_kernel(%arg0: i32, %arg1: i32, %arg2: i32, %arg3: memref<32x256xf32, #tpu.memory_space<vmem>>, %arg4: memref<256x128xbf16, #tpu.memory_space<vmem>>, %arg5: memref<256x128xbf16, #tpu.memory_space<vmem>>, %arg6: memref<32x128xbf16, #tpu.memory_space<vmem>>, %arg7: memref<1x128xf32, #tpu.memory_space<vmem>>, %arg8: memref<32x128xf32, #tpu.memory_space<vmem>>, %arg9: memref<8x128xf32, #tpu.memory_space<vmem>>, %arg10: memref<32x128xf32, #tpu.memory_space<vmem>>, %arg11: memref<32x128xf32, #tpu.memory_space<vmem>>) attributes {dimension_semantics = [#tpu.dimension_semantics<parallel>, #tpu.dimension_semantics<parallel>, #tpu.dimension_semantics<arbitrary>], iteration_bounds = array<i64: 1, 3, 1>, scalar_prefetch = 0 : i64, scratch_operands = 2 : i64, tpu.core_type = #tpu.core_type<tc>, window_params = [{transform_indices = @transform_0, window_bounds = array<i64: 32, 256>}, {transform_indices = @transform_1, window_bounds = array<i64: 256, 128>}, {transform_indices = @transform_2, window_bounds = array<i64: 256, 128>}, {transform_indices = @transform_3, window_bounds = array<i64: 32, 128>}, {transform_indices = @transform_4, window_bounds = array<i64: 1, 128>}, {transform_indices = @transform_5, window_bounds = array<i64: 32, 128>}, {transform_indices = @transform_6, window_bounds = array<i64: 8, 128>}]} {
    %c0_i32 = arith.constant 0 : i32
    %0 = arith.cmpi eq, %arg2, %c0_i32 : i32
    %1 = arith.extui %0 : i1 to i32
    %c0_i32_0 = arith.constant 0 : i32
    %2 = arith.cmpi ne, %1, %c0_i32_0 : i32
    scf.if %2 {
      %cst_19 = arith.constant 0.000000e+00 : f32
      %23 = vector.broadcast %cst_19 : f32 to vector<32x128xf32>
      %c0_20 = arith.constant 0 : index
      %c0_21 = arith.constant 0 : index
      %24 = vector.load %arg10[%c0_20, %c0_21] : memref<32x128xf32, #tpu.memory_space<vmem>>, vector<32x128xf32>
      tpu.vector_store %arg10[%c0_20, %c0_21], %23 {strides = array<i32>} : memref<32x128xf32, #tpu.memory_space<vmem>>, vector<32x128xf32>,
      %cst_22 = arith.constant 0.000000e+00 : f32
      %25 = vector.broadcast %cst_22 : f32 to vector<32x128xf32>
      %c0_23 = arith.constant 0 : index
      %c0_24 = arith.constant 0 : index
      %26 = vector.load %arg11[%c0_23, %c0_24] : memref<32x128xf32, #tpu.memory_space<vmem>>, vector<32x128xf32>
      tpu.vector_store %arg11[%c0_23, %c0_24], %25 {strides = array<i32>} : memref<32x128xf32, #tpu.memory_space<vmem>>, vector<32x128xf32>,
      %cst_25 = arith.constant 0.000000e+00 : f32
      %27 = vector.broadcast %cst_25 : f32 to vector<8x128xf32>
      %c0_26 = arith.constant 0 : index
      %c0_27 = arith.constant 0 : index
      %28 = vector.load %arg9[%c0_26, %c0_27] : memref<8x128xf32, #tpu.memory_space<vmem>>, vector<8x128xf32>
      tpu.vector_store %arg9[%c0_26, %c0_27], %27 {strides = array<i32>} : memref<8x128xf32, #tpu.memory_space<vmem>>, vector<8x128xf32>,
    } else {
    }
    %c0 = arith.constant 0 : index
    %c0_1 = arith.constant 0 : index
    %3 = vector.load %arg3[%c0, %c0_1] : memref<32x256xf32, #tpu.memory_space<vmem>>, vector<32x256xf32>
    %c0_2 = arith.constant 0 : index
    %c0_3 = arith.constant 0 : index
    %4 = vector.load %arg4[%c0_2, %c0_3] : memref<256x128xbf16, #tpu.memory_space<vmem>>, vector<256x128xbf16>
    %c0_4 = arith.constant 0 : index
    %c0_5 = arith.constant 0 : index
    %5 = vector.load %arg5[%c0_4, %c0_5] : memref<256x128xbf16, #tpu.memory_space<vmem>>, vector<256x128xbf16>
    %c0_6 = arith.constant 0 : index
    %c0_7 = arith.constant 0 : index
    %6 = vector.load %arg10[%c0_6, %c0_7] : memref<32x128xf32, #tpu.memory_space<vmem>>, vector<32x128xf32>
    %7 = arith.truncf %3 : vector<32x256xf32> to vector<32x256xbf16>
    %cst = arith.constant dense<0.000000e+00> : vector<32x128xf32>
    %8 = tpu.matmul %7, %4, %cst {dimension_numbers = #tpu.dot_dimension_numbers<[1], [0], [0], [1], [0, 0, 1, 1], [], []>} : vector<32x256xbf16>, vector<256x128xbf16>, vector<32x128xf32> -> vector<32x128xf32>
    %9 = arith.addf %6, %8 : vector<32x128xf32>
    %c0_8 = arith.constant 0 : index
    %c0_9 = arith.constant 0 : index
    %10 = vector.load %arg10[%c0_8, %c0_9] : memref<32x128xf32, #tpu.memory_space<vmem>>, vector<32x128xf32>
    tpu.vector_store %arg10[%c0_8, %c0_9], %9 {strides = array<i32>} : memref<32x128xf32, #tpu.memory_space<vmem>>, vector<32x128xf32>,
    %c0_10 = arith.constant 0 : index
    %c0_11 = arith.constant 0 : index
    %11 = vector.load %arg11[%c0_10, %c0_11] : memref<32x128xf32, #tpu.memory_space<vmem>>, vector<32x128xf32>
    %12 = arith.mulf %3, %3 : vector<32x256xf32>
    %13 = arith.truncf %12 : vector<32x256xf32> to vector<32x256xbf16>
    %cst_12 = arith.constant dense<0.000000e+00> : vector<32x128xf32>
    %14 = tpu.matmul %13, %5, %cst_12 {dimension_numbers = #tpu.dot_dimension_numbers<[1], [0], [0], [1], [0, 0, 1, 1], [], []>} : vector<32x256xbf16>, vector<256x128xbf16>, vector<32x128xf32> -> vector<32x128xf32>
    %15 = arith.addf %11, %14 : vector<32x128xf32>
    %c0_13 = arith.constant 0 : index
    %c0_14 = arith.constant 0 : index
    %16 = vector.load %arg11[%c0_13, %c0_14] : memref<32x128xf32, #tpu.memory_space<vmem>>, vector<32x128xf32>
    tpu.vector_store %arg11[%c0_13, %c0_14], %15 {strides = array<i32>} : memref<32x128xf32, #tpu.memory_space<vmem>>, vector<32x128xf32>,
    %c0_i32_15 = arith.constant 0 : i32
    %17 = arith.cmpi eq, %arg0, %c0_i32_15 : i32
    %18 = arith.extui %17 : i1 to i32
    %c0_i32_16 = arith.constant 0 : i32
    %19 = arith.cmpi ne, %18, %c0_i32_16 : i32
    scf.if %19 {
      %23 = arith.extf %4 : vector<256x128xbf16> to vector<256x128xf32>
      %24 = arith.extf %5 : vector<256x128xbf16> to vector<256x128xf32>
      %25 = arith.mulf %23, %23 : vector<256x128xf32>
      %26 = arith.addf %24, %25 : vector<256x128xf32>
      %cst_19 = arith.constant 1.000000e+04 : f32
      %27 = vector.broadcast %cst_19 : f32 to vector<256x128xf32>
      %28 = arith.mulf %27, %26 : vector<256x128xf32>
      %29 = math.log %24 : vector<256x128xf32>
      %30 = arith.subf %28, %29 : vector<256x128xf32>
      %cst_20 = arith.constant -10.2103405 : f32
      %31 = vector.broadcast %cst_20 : f32 to vector<256x128xf32>
      %32 = arith.addf %30, %31 : vector<256x128xf32>
      %c0_21 = arith.constant 0 : index
      %c0_22 = arith.constant 0 : index
      %33 = vector.load %arg9[%c0_21, %c0_22] : memref<8x128xf32, #tpu.memory_space<vmem>>, vector<8x128xf32>
      %34 = vector.shape_cast %32 : vector<256x128xf32> to vector<32x8x128xf32>
      %cst_23 = arith.constant dense<0.000000e+00> : vector<8x128xf32>
      %35 = vector.multi_reduction <add>, %34, %cst_23 [0] : vector<32x8x128xf32> to vector<8x128xf32>
      %36 = arith.addf %33, %35 : vector<8x128xf32>
      %c0_24 = arith.constant 0 : index
      %c0_25 = arith.constant 0 : index
      %37 = vector.load %arg9[%c0_24, %c0_25] : memref<8x128xf32, #tpu.memory_space<vmem>>, vector<8x128xf32>
      tpu.vector_store %arg9[%c0_24, %c0_25], %36 {strides = array<i32>} : memref<8x128xf32, #tpu.memory_space<vmem>>, vector<8x128xf32>,
    } else {
    }
    %c0_i32_17 = arith.constant 0 : i32
    %20 = arith.cmpi eq, %arg2, %c0_i32_17 : i32
    %21 = arith.extui %20 : i1 to i32
    %c0_i32_18 = arith.constant 0 : i32
    %22 = arith.cmpi ne, %21, %c0_i32_18 : i32
    scf.if %22 {
      %c0_19 = arith.constant 0 : index
      %c0_20 = arith.constant 0 : index
      %23 = vector.load %arg10[%c0_19, %c0_20] : memref<32x128xf32, #tpu.memory_space<vmem>>, vector<32x128xf32>
      %c0_21 = arith.constant 0 : index
      %c0_22 = arith.constant 0 : index
      %24 = vector.load %arg11[%c0_21, %c0_22] : memref<32x128xf32, #tpu.memory_space<vmem>>, vector<32x128xf32>
      %25 = math.sqrt %24 : vector<32x128xf32>
      %c0_23 = arith.constant 0 : index
      %c0_24 = arith.constant 0 : index
      %26 = vector.load %arg6[%c0_23, %c0_24] : memref<32x128xbf16, #tpu.memory_space<vmem>>, vector<32x128xbf16>
      %27 = arith.extf %26 : vector<32x128xbf16> to vector<32x128xf32>
      %28 = arith.mulf %25, %27 : vector<32x128xf32>
      %29 = arith.addf %23, %28 : vector<32x128xf32>
      %c0_25 = arith.constant 0 : index
      %c0_26 = arith.constant 0 : index
      %30 = vector.load %arg7[%c0_25, %c0_26] : memref<1x128xf32, #tpu.memory_space<vmem>>, vector<1x128xf32>
      %31 = vector.broadcast %30 : vector<1x128xf32> to vector<32x128xf32>
      %32 = arith.addf %29, %31 : vector<32x128xf32>
      %c0_27 = arith.constant 0 : index
      %c0_28 = arith.constant 0 : index
      %33 = vector.load %arg8[%c0_27, %c0_28] : memref<32x128xf32, #tpu.memory_space<vmem>>, vector<32x128xf32>
      tpu.vector_store %arg8[%c0_27, %c0_28], %32 {strides = array<i32>} : memref<32x128xf32, #tpu.memory_space<vmem>>, vector<32x128xf32>,
    } else {
    }
    return
  }
  func.func @transform_0(%arg0: i32, %arg1: i32, %arg2: i32) -> (i32, i32) {
    %c0_i32 = arith.constant 0 : i32
    return %arg0, %arg2 : i32, i32
  }
  func.func @transform_1(%arg0: i32, %arg1: i32, %arg2: i32) -> (i32, i32) {
    %c0_i32 = arith.constant 0 : i32
    return %arg2, %arg1 : i32, i32
  }
  func.func @transform_2(%arg0: i32, %arg1: i32, %arg2: i32) -> (i32, i32) {
    %c0_i32 = arith.constant 0 : i32
    return %arg2, %arg1 : i32, i32
  }
  func.func @transform_3(%arg0: i32, %arg1: i32, %arg2: i32) -> (i32, i32) {
    %c0_i32 = arith.constant 0 : i32
    return %arg0, %arg1 : i32, i32
  }
  func.func @transform_4(%arg0: i32, %arg1: i32, %arg2: i32) -> (i32, i32) {
    %c0_i32 = arith.constant 0 : i32
    %c0_i32_0 = arith.constant 0 : i32
    return %c0_i32, %arg1 : i32, i32
  }
  func.func @transform_5(%arg0: i32, %arg1: i32, %arg2: i32) -> (i32, i32) {
    %c0_i32 = arith.constant 0 : i32
    return %arg0, %arg1 : i32, i32
  }
  func.func @transform_6(%arg0: i32, %arg1: i32, %arg2: i32) -> (i32, i32) {
    %c0_i32 = arith.constant 0 : i32
    return %arg0, %arg1 : i32, i32
  }
}

</mosaic_0001>

<llo_original>
// kernel: tpu_custom_call.1
$region0: #{tpu_custom_call.1}
  #allocation0 [shape = 'u32[]', space=smem, size = 0x4, offset = 0x4, fixed_abs, tag = 'smem constant byte address 0x4 - core index']
  #allocation1 [shape = 'u32[144,128]{1,0:T(1,128)}', space=vmem, size = 0x12000, scoped, tag = 'internal scratch']
  #allocation2 [shape = 'f32[32,128]{1,0:T(8,128)}', space=vmem, size = 0x4000, scoped, tag = 'scratch operand']
  #allocation3 [shape = 'f32[32,128]{1,0:T(8,128)}', space=vmem, size = 0x4000, scoped, tag = 'scratch operand']
  %s0 = inlined_call_operand.hbm [shape: f32[32,256], index: 0, kind: input, shape index: {}]
  %s1 = inlined_call_operand.hbm [shape: bf16[256,384], index: 1, kind: input, shape index: {}]
  %s2 = inlined_call_operand.hbm [shape: bf16[256,384], index: 2, kind: input, shape index: {}]
  %s3 = inlined_call_operand.hbm [shape: bf16[32,384], index: 3, kind: input, shape index: {}]
  %s4 = inlined_call_operand.vmem [shape: f32[1,384], index: 4, kind: input, shape index: {}]
  %s5 = inlined_call_operand.hbm [shape: f32[32,384], index: 5, kind: output, shape index: {0}]
  %s6 = inlined_call_operand.hbm [shape: f32[8,384], index: 6, kind: output, shape index: {1}]
  %7 = xla_tuple %s5, %s6
  %s8 = sld [smem:[#allocation0]]
  $region89: #{tpu_custom_call.1} parent=0
    _
  %s10 = ssub.s32 1, %s8
  %s11 = scalar_select 0, %s10, %s8
  $region1: #{tpu_custom_call.1} parent=0
    #allocation4 [shape = 'u8[32768]{0}', space=vmem, size = 0x8000, scoped, tag = 'input window, operand 0, single buffered']
    #allocation5 [shape = 's32[2]{0}', space=sflag, size = 0x8, scoped, tag = 'scoped memory for tpu_custom_call.1']
    #allocation6 [shape = 's32[2]{0}', space=sflag, size = 0x8, scoped, tag = 'scoped memory for tpu_custom_call.1']
    #allocation7 [shape = 'u8[131072]{0}', space=vmem, size = 0x20000, scoped, tag = 'input window, operand 1']
    #allocation8 [shape = 's32[2]{0}', space=sflag, size = 0x8, scoped, tag = 'scoped memory for tpu_custom_call.1']
    #allocation9 [shape = 'u8[131072]{0}', space=vmem, size = 0x20000, scoped, tag = 'input window, operand 2']
    #allocation10 [shape = 'u8[16384]{0}', space=vmem, size = 0x4000, scoped, tag = 'input window, operand 3']
    #allocation11 [shape = 's32[2]{0}', space=sflag, size = 0x8, scoped, tag = 'scoped memory for tpu_custom_call.1']
    #allocation12 [shape = 'u8[32768]{0}', space=vmem, size = 0x8000, scoped, tag = 'output window, operand 0']
    #allocation13 [shape = 'u8[8192]{0}', space=vmem, size = 0x2000, scoped, tag = 'output window, operand 1']
    #allocation14 [shape = 's32[2]{0}', space=sflag, size = 0x8, scoped, tag = 'scoped memory for tpu_custom_call.1']
    %12 = vsyncpa [#allocation5], 0
    %13 = vsyncpa [#allocation8], 0
    %s14 = scalar_lea.sflag [#allocation8], 1
    %15 = vsyncpa %s14, 0
    %16 = vsyncpa [#allocation11], 0
    %s17 = scalar_lea.sflag [#allocation11], 1
    %18 = vsyncpa %s17, 0
    %19 = vsyncpa [#allocation6], 0
    %s20 = scalar_lea.sflag [#allocation6], 1
    %21 = vsyncpa %s20, 0
    %22 = vsyncpa [#allocation14], 0
    %s23 = scalar_lea.sflag [#allocation14], 1
    %24 = vsyncpa %s23, 0
    loop: start=0, step=1, limit=5
    $region2: #{tpu_custom_call.1} parent=1 // loop_pre_header
      _
    $region3: #{tpu_custom_call.1} parent=1 // loop_header
      %s26 = sphi 0, %s30
      %p27 = scmp.ge.s32.totalorder %s26, 5
      %s33 = sphi 0, %s52
      %s34 = sphi 0, %s48
      %s35 = sphi 0, %s44
      %s36 = sphi 0, %s33
      %s37 = sphi 0, %s34
      %s38 = sphi 0, %s35
      %s39 = sphi 0, %s36
      %s40 = sphi 0, %s37
      %s41 = sphi 0, %s38
      %s57 = sphi 0, %s59
      %s60 = sphi 0, %s57
      %s61 = sphi 0, %s60
      %s77 = sphi 0, %s61
      %s85 = sphi 0, %s87
      %s88 = sphi 0, %s85
      %s89 = sphi 0, %s88
      %s105 = sphi 0, %s89
      %s113 = sphi 0, %s115
      %s116 = sphi 0, %s113
      %s117 = sphi 0, %s116
      %s133 = sphi 0, %s117
      %s141 = sphi 0, %s143
      %s144 = sphi 0, %s141
      %s145 = sphi 0, %s144
      %s161 = sphi 0, %s145
      %s167 = sphi 0, %s169
      %s170 = sphi 0, %s167
      %s171 = sphi 0, %s170
      %s187 = sphi 0, %s171
      %s195 = sphi 0, %s197
      %s198 = sphi 0, %s195
      %s199 = sphi 0, %s198
      %s215 = sphi 0, %s199
      %s223 = sphi 0, %s225
      %s226 = sphi 0, %s223
      %s227 = sphi 0, %s226
      %s243 = sphi 0, %s227
    $region4: #{tpu_custom_call.1} parent=1 // loop_header_branch
      %29 = sbr.rel (%p27) target = $region8
    $region5: #{tpu_custom_call.1} parent=1 // loop_body
      %s31 = ssub.s32 %s26, 1
      %s32 = ssub.s32 %s26, 2
      %s42 = sadd.s32 1, %s35
      %p43 = scmp.ge.s32.totalorder %s42, 1
      %s44 = scalar_select %p43, 0, %s42
      %s45 = sadd.s32 1, %s34
      %s46 = scalar_select %p43, %s45, %s34
      %p47 = scmp.ge.s32.totalorder %s46, 3
      %s48 = scalar_select %p47, 0, %s46
      %s49 = sadd.s32 1, %s33
      %s50 = scalar_select %p47, %s49, %s33
      %p51 = scmp.ge.s32.totalorder %s50, 1
      %s52 = scalar_select %p51, 0, %s50
      %s53 = ssub.s32 %s33, %s52
      %s54 = ssub.s32 %s35, %s44
      %s55 = sor.u32 %s53, %s54
      %p56 = scmp.eq.s32.totalorder %s55, 0
      %s58 = sadd.s32 %s57, 1
      %s59 = scalar_select %p56, %s57, %s58
      %p62 = pneg %p56
      %p63 = scmp.eq.s32.totalorder %s26, 2
      %p64 = por %p62, %p63
      %p65 = scmp.ne.s32.totalorder %s57, %s60
      %p66 = scmp.eq.s32.totalorder %s26, 0
      %p67 = por %p65, %p66
      %p68 = scmp.ne.s32.totalorder %s57, %s60
      %p69 = scmp.eq.s32.totalorder %s31, 2
      %p70 = por %p68, %p69
      %p71 = scmp.ne.s32.totalorder %s60, %s61
      %p72 = scmp.eq.s32.totalorder %s31, 0
      %p73 = por %p71, %p72
      %p74 = scmp.ne.s32.totalorder %s60, %s61
      %p75 = scmp.eq.s32.totalorder %s32, 2
      %p76 = por %p74, %p75
      %p78 = scmp.ne.s32.totalorder %s61, %s77
      %p79 = scmp.eq.s32.totalorder %s32, 0
      %p80 = por %p78, %p79
      %s81 = ssub.s32 %s35, %s44
      %s82 = ssub.s32 %s34, %s48
      %s83 = sor.u32 %s81, %s82
      %p84 = scmp.eq.s32.totalorder %s83, 0
      %s86 = sadd.s32 %s85, 1
      %s87 = scalar_select %p84, %s85, %s86
      %p90 = pneg %p84
      %p91 = scmp.eq.s32.totalorder %s26, 2
      %p92 = por %p90, %p91
      %p93 = scmp.ne.s32.totalorder %s85, %s88
      %p94 = scmp.eq.s32.totalorder %s26, 0
      %p95 = por %p93, %p94
      %p96 = scmp.ne.s32.totalorder %s85, %s88
      %p97 = scmp.eq.s32.totalorder %s31, 2
      %p98 = por %p96, %p97
      %p99 = scmp.ne.s32.totalorder %s88, %s89
      %p100 = scmp.eq.s32.totalorder %s31, 0
      %p101 = por %p99, %p100
      %p102 = scmp.ne.s32.totalorder %s88, %s89
      %p103 = scmp.eq.s32.totalorder %s32, 2
      %p104 = por %p102, %p103
      %p106 = scmp.ne.s32.totalorder %s89, %s105
      %p107 = scmp.eq.s32.totalorder %s32, 0
      %p108 = por %p106, %p107
      %s109 = ssub.s32 %s35, %s44
      %s110 = ssub.s32 %s34, %s48
      %s111 = sor.u32 %s109, %s110
      %p112 = scmp.eq.s32.totalorder %s111, 0
      %s114 = sadd.s32 %s113, 1
      %s115 = scalar_select %p112, %s113, %s114
      %p118 = pneg %p112
      %p119 = scmp.eq.s32.totalorder %s26, 2
      %p120 = por %p118, %p119
      %p121 = scmp.ne.s32.totalorder %s113, %s116
      %p122 = scmp.eq.s32.totalorder %s26, 0
      %p123 = por %p121, %p122
      %p124 = scmp.ne.s32.totalorder %s113, %s116
      %p125 = scmp.eq.s32.totalorder %s31, 2
      %p126 = por %p124, %p125
      %p127 = scmp.ne.s32.totalorder %s116, %s117
      %p128 = scmp.eq.s32.totalorder %s31, 0
      %p129 = por %p127, %p128
      %p130 = scmp.ne.s32.totalorder %s116, %s117
      %p131 = scmp.eq.s32.totalorder %s32, 2
      %p132 = por %p130, %p131
      %p134 = scmp.ne.s32.totalorder %s117, %s133
      %p135 = scmp.eq.s32.totalorder %s32, 0
      %p136 = por %p134, %p135
      %s137 = ssub.s32 %s33, %s52
      %s138 = ssub.s32 %s34, %s48
      %s139 = sor.u32 %s137, %s138
      %p140 = scmp.eq.s32.totalorder %s139, 0
      %s142 = sadd.s32 %s141, 1
      %s143 = scalar_select %p140, %s141, %s142
      %p146 = pneg %p140
      %p147 = scmp.eq.s32.totalorder %s26, 2
      %p148 = por %p146, %p147
      %p149 = scmp.ne.s32.totalorder %s141, %s144
      %p150 = scmp.eq.s32.totalorder %s26, 0
      %p151 = por %p149, %p150
      %p152 = scmp.ne.s32.totalorder %s141, %s144
      %p153 = scmp.eq.s32.totalorder %s31, 2
      %p154 = por %p152, %p153
      %p155 = scmp.ne.s32.totalorder %s144, %s145
      %p156 = scmp.eq.s32.totalorder %s31, 0
      %p157 = por %p155, %p156
      %p158 = scmp.ne.s32.totalorder %s144, %s145
      %p159 = scmp.eq.s32.totalorder %s32, 2
      %p160 = por %p158, %p159
      %p162 = scmp.ne.s32.totalorder %s145, %s161
      %p163 = scmp.eq.s32.totalorder %s32, 0
      %p164 = por %p162, %p163
      %s165 = ssub.s32 %s34, %s48
      %p166 = scmp.eq.s32.totalorder %s165, 0
      %s168 = sadd.s32 %s167, 1
      %s169 = scalar_select %p166, %s167, %s168
      %p172 = pneg %p166
      %p173 = scmp.eq.s32.totalorder %s26, 2
      %p174 = por %p172, %p173
      %p175 = scmp.ne.s32.totalorder %s167, %s170
      %p176 = scmp.eq.s32.totalorder %s26, 0
      %p177 = por %p175, %p176
      %p178 = scmp.ne.s32.totalorder %s167, %s170
      %p179 = scmp.eq.s32.totalorder %s31, 2
      %p180 = por %p178, %p179
      %p181 = scmp.ne.s32.totalorder %s170, %s171
      %p182 = scmp.eq.s32.totalorder %s31, 0
      %p183 = por %p181, %p182
      %p184 = scmp.ne.s32.totalorder %s170, %s171
      %p185 = scmp.eq.s32.totalorder %s32, 2
      %p186 = por %p184, %p185
      %p188 = scmp.ne.s32.totalorder %s171, %s187
      %p189 = scmp.eq.s32.totalorder %s32, 0
      %p190 = por %p188, %p189
      %s191 = ssub.s32 %s33, %s52
      %s192 = ssub.s32 %s34, %s48
      %s193 = sor.u32 %s191, %s192
      %p194 = scmp.eq.s32.totalorder %s193, 0
      %s196 = sadd.s32 %s195, 1
      %s197 = scalar_select %p194, %s195, %s196
      %p200 = pneg %p194
      %p201 = scmp.eq.s32.totalorder %s26, 2
      %p202 = por %p200, %p201
      %p203 = scmp.ne.s32.totalorder %s195, %s198
      %p204 = scmp.eq.s32.totalorder %s26, 0
      %p205 = por %p203, %p204
      %p206 = scmp.ne.s32.totalorder %s195, %s198
      %p207 = scmp.eq.s32.totalorder %s31, 2
      %p208 = por %p206, %p207
      %p209 = scmp.ne.s32.totalorder %s198, %s199
      %p210 = scmp.eq.s32.totalorder %s31, 0
      %p211 = por %p209, %p210
      %p212 = scmp.ne.s32.totalorder %s198, %s199
      %p213 = scmp.eq.s32.totalorder %s32, 2
      %p214 = por %p212, %p213
      %p216 = scmp.ne.s32.totalorder %s199, %s215
      %p217 = scmp.eq.s32.totalorder %s32, 0
      %p218 = por %p216, %p217
      %s219 = ssub.s32 %s33, %s52
      %s220 = ssub.s32 %s34, %s48
      %s221 = sor.u32 %s219, %s220
      %p222 = scmp.eq.s32.totalorder %s221, 0
      %s224 = sadd.s32 %s223, 1
      %s225 = scalar_select %p222, %s223, %s224
      %p228 = pneg %p222
      %p229 = scmp.eq.s32.totalorder %s26, 2
      %p230 = por %p228, %p229
      %p231 = scmp.ne.s32.totalorder %s223, %s226
      %p232 = scmp.eq.s32.totalorder %s26, 0
      %p233 = por %p231, %p232
      %p234 = scmp.ne.s32.totalorder %s223, %s226
      %p235 = scmp.eq.s32.totalorder %s31, 2
      %p236 = por %p234, %p235
      %p237 = scmp.ne.s32.totalorder %s226, %s227
      %p238 = scmp.eq.s32.totalorder %s31, 0
      %p239 = por %p237, %p238
      %p240 = scmp.ne.s32.totalorder %s226, %s227
      %p241 = scmp.eq.s32.totalorder %s32, 2
      %p242 = por %p240, %p241
      %p244 = scmp.ne.s32.totalorder %s227, %s243
      %p245 = scmp.eq.s32.totalorder %s32, 0
      %p246 = por %p244, %p245
      %p247 = scmp.le.s32.totalorder 1, %s26
      %p248 = scmp.lt.s32.totalorder %s26, 4
      %p249 = pnand %p247, %p248
      %p250 = pneg %p249
      // Predicated region
      $region9: #{tpu_custom_call.1} parent=5 // pred_check
        _
      $region10: #{tpu_custom_call.1} parent=5 // pred_check_branch
        %252 = sbr.rel (%p249) target = $region12
      $region11: #{tpu_custom_call.1} parent=5 // pred_region
        %s253 = ssub.s32 %s26, 1
        // Predicated region
        $region13: #{tpu_custom_call.1} parent=11 // pred_check
          %p254 = pneg %p73
        $region14: #{tpu_custom_call.1} parent=11 // pred_check_branch
          %256 = sbr.rel (%p254) target = $region16
        $region15: #{tpu_custom_call.1} parent=11 // pred_region
          %s257 = smul.u32 4, %s36
          %s258 = smul.u32 2, %s38
          %s260 = ssub.s32 1024, 1024
          %261 = vsyncadd [#allocation5], %s260
          %s262 = smul.addr %s257, 2
          %s263 = sadd.s32 %s258, %s262
          %s264 = smul.addr %s263, 128
          %s265 = scalar_lea.hbm %s0, %s264
          %s266 = sshll.u32 [#allocation4], 4
          %s267 = int_to_ptr.vmem [resolvable:$true] %s266
          %272 = dma.hbm_to_vmem [thread:$0]  %s265, 1024, %s267, [#allocation5], 256, 256, 16
        $region16: #{tpu_custom_call.1} parent=11 // pred_fallthru
          _
      $region12: #{tpu_custom_call.1} parent=5 // pred_fallthru
        _
      %p273 = scmp.lt.s32.totalorder %s26, 3
      // Predicated region
      $region17: #{tpu_custom_call.1} parent=5 // pred_check
        %p274 = pneg %p273
      $region18: #{tpu_custom_call.1} parent=5 // pred_check_branch
        %276 = sbr.rel (%p274) target = $region20
      $region19: #{tpu_custom_call.1} parent=5 // pred_region
        // Predicated region
        $region21: #{tpu_custom_call.1} parent=19 // pred_check
          %p277 = pneg %p95
        $region22: #{tpu_custom_call.1} parent=19 // pred_check_branch
          %279 = sbr.rel (%p277) target = $region24
        $region23: #{tpu_custom_call.1} parent=19 // pred_region
          %s280 = sand.u32 %s26, 1
          %s281 = scalar_lea.sflag [#allocation8], %s280
          %s282 = sand.u32 %s85, 1
          %s283 = smul.addr %s282, 128
          %s284 = scalar_lea.vmem [#allocation7], %s283
          %s285 = smul.u32 32, %s35
          %s287 = ssub.s32 2048, 2048
          %288 = vsyncadd %s281, %s287
          %s289 = smul.addr %s285, 3
          %s290 = sadd.s32 %s34, %s289
          %s291 = smul.addr %s290, 64
          %s292 = scalar_lea.hbm %s1, %s291
          %s293 = sshll.u32 %s284, 4
          %s294 = int_to_ptr.vmem [resolvable:$true] %s293
          %299 = dma.hbm_to_vmem [thread:$0]  %s292, 2048, %s294, %s281, 192, 64, 4
        $region24: #{tpu_custom_call.1} parent=19 // pred_fallthru
          _
        // Predicated region
        $region25: #{tpu_custom_call.1} parent=19 // pred_check
          %p300 = pneg %p123
        $region26: #{tpu_custom_call.1} parent=19 // pred_check_branch
          %302 = sbr.rel (%p300) target = $region28
        $region27: #{tpu_custom_call.1} parent=19 // pred_region
          %s303 = sand.u32 %s26, 1
          %s304 = scalar_lea.sflag [#allocation8], %s303
          %s305 = sand.u32 %s113, 1
          %s306 = smul.addr %s305, 128
          %s307 = scalar_lea.vmem [#allocation9], %s306
          %s308 = smul.u32 32, %s35
          %s310 = ssub.s32 2048, 2048
          %311 = vsyncadd %s304, %s310
          %s312 = smul.addr %s308, 3
          %s313 = sadd.s32 %s34, %s312
          %s314 = smul.addr %s313, 64
          %s315 = scalar_lea.hbm %s2, %s314
          %s316 = sshll.u32 %s307, 4
          %s317 = int_to_ptr.vmem [resolvable:$true] %s316
          %322 = dma.hbm_to_vmem [thread:$0]  %s315, 2048, %s317, %s304, 192, 64, 4
        $region28: #{tpu_custom_call.1} parent=19 // pred_fallthru
          _
        // Predicated region
        $region29: #{tpu_custom_call.1} parent=19 // pred_check
          %p323 = pneg %p151
        $region30: #{tpu_custom_call.1} parent=19 // pred_check_branch
          %325 = sbr.rel (%p323) target = $region32
        $region31: #{tpu_custom_call.1} parent=19 // pred_region
          %s326 = sand.u32 %s141, 1
          %s327 = scalar_lea.sflag [#allocation11], %s326
          %s328 = sand.u32 %s141, 1
          %s329 = smul.addr %s328, 16
          %s330 = scalar_lea.vmem [#allocation10], %s329
          %s331 = smul.u32 4, %s33
          %s333 = ssub.s32 256, 256
          %334 = vsyncadd %s327, %s333
          %s335 = smul.addr %s331, 3
          %s336 = sadd.s32 %s34, %s335
          %s337 = smul.addr %s336, 64
          %s338 = scalar_lea.hbm %s3, %s337
          %s339 = sshll.u32 %s330, 4
          %s340 = int_to_ptr.vmem [resolvable:$true] %s339
          %345 = dma.hbm_to_vmem [thread:$0]  %s338, 256, %s340, %s327, 192, 64, 4
        $region32: #{tpu_custom_call.1} parent=19 // pred_fallthru
          _
        // Predicated region
        $region33: #{tpu_custom_call.1} parent=19 // pred_check
          %p346 = pneg %p177
        $region34: #{tpu_custom_call.1} parent=19 // pred_check_branch
          %348 = sbr.rel (%p346) target = $region36
        $region35: #{tpu_custom_call.1} parent=19 // pred_region
          %p349 = scmp.lt.s32.totalorder %s34, 2
          %s350 = scalar_select %p349, %s34, 2
          %s351 = scalar_lea.vmem %s4, %s350
        $region36: #{tpu_custom_call.1} parent=19 // pred_fallthru
          _
      $region20: #{tpu_custom_call.1} parent=5 // pred_fallthru
        _
      %p352 = scmp.le.s32.totalorder 1, %s26
      %p353 = scmp.lt.s32.totalorder %s26, 4
      %p354 = pnand %p352, %p353
      %p355 = pneg %p354
      // Predicated region
      $region37: #{tpu_custom_call.1} parent=5 // pred_check
        _
      $region38: #{tpu_custom_call.1} parent=5 // pred_check_branch
        %357 = sbr.rel (%p354) target = $region40
      $region39: #{tpu_custom_call.1} parent=5 // pred_region
        %s358 = ssub.s32 %s26, 1
        // Predicated region
        $region41: #{tpu_custom_call.1} parent=39 // pred_check
          %p359 = pneg %p73
        $region42: #{tpu_custom_call.1} parent=39 // pred_check_branch
          %361 = sbr.rel (%p359) target = $region44
        $region43: #{tpu_custom_call.1} parent=39 // pred_region
          %362 = dma.done [#allocation5], 1024
        $region44: #{tpu_custom_call.1} parent=39 // pred_fallthru
          _
        %s363 = sand.u32 %s31, 1
        %s364 = scalar_lea.sflag [#allocation8], %s363
        %s365 = sand.u32 %s88, 1
        %s366 = smul.addr %s365, 128
        %s367 = scalar_lea.vmem [#allocation7], %s366
        // Predicated region
        $region45: #{tpu_custom_call.1} parent=39 // pred_check
          %p368 = pneg %p101
        $region46: #{tpu_custom_call.1} parent=39 // pred_check_branch
          %370 = sbr.rel (%p368) target = $region48
        $region47: #{tpu_custom_call.1} parent=39 // pred_region
          %371 = dma.done %s364, 2048
        $region48: #{tpu_custom_call.1} parent=39 // pred_fallthru
          _
        %s372 = sand.u32 %s31, 1
        %s373 = scalar_lea.sflag [#allocation8], %s372
        %s374 = sand.u32 %s116, 1
        %s375 = smul.addr %s374, 128
        %s376 = scalar_lea.vmem [#allocation9], %s375
        // Predicated region
        $region49: #{tpu_custom_call.1} parent=39 // pred_check
          %p377 = pneg %p129
        $region50: #{tpu_custom_call.1} parent=39 // pred_check_branch
          %379 = sbr.rel (%p377) target = $region52
        $region51: #{tpu_custom_call.1} parent=39 // pred_region
          %380 = dma.done %s373, 2048
        $region52: #{tpu_custom_call.1} parent=39 // pred_fallthru
          _
        %s381 = sand.u32 %s144, 1
        %s382 = scalar_lea.sflag [#allocation11], %s381
        %s383 = sand.u32 %s144, 1
        %s384 = smul.addr %s383, 16
        %s385 = scalar_lea.vmem [#allocation10], %s384
        // Predicated region
        $region53: #{tpu_custom_call.1} parent=39 // pred_check
          %p386 = pneg %p157
        $region54: #{tpu_custom_call.1} parent=39 // pred_check_branch
          %388 = sbr.rel (%p386) target = $region56
        $region55: #{tpu_custom_call.1} parent=39 // pred_region
          %389 = dma.done %s382, 256
        $region56: #{tpu_custom_call.1} parent=39 // pred_fallthru
          _
        %p390 = pneg %p73
        %p391 = pneg %p70
        %s392 = sand.u32 %s31, 1
        %s393 = scalar_lea.sflag [#allocation8], %s392
        %s394 = sand.u32 %s88, 1
        %s395 = smul.addr %s394, 128
        %s396 = scalar_lea.vmem [#allocation7], %s395
        %p397 = pneg %p101
        %p398 = pneg %p98
        %s399 = sand.u32 %s31, 1
        %s400 = scalar_lea.sflag [#allocation8], %s399
        %s401 = sand.u32 %s116, 1
        %s402 = smul.addr %s401, 128
        %s403 = scalar_lea.vmem [#allocation9], %s402
        %p404 = pneg %p129
        %p405 = pneg %p126
        %s406 = sand.u32 %s144, 1
        %s407 = scalar_lea.sflag [#allocation11], %s406
        %s408 = sand.u32 %s144, 1
        %s409 = smul.addr %s408, 16
        %s410 = scalar_lea.vmem [#allocation10], %s409
        %p411 = pneg %p157
        %p412 = pneg %p154
        %p413 = scmp.lt.s32.totalorder %s37, 2
        %s414 = scalar_select %p413, %s37, 2
        %s415 = scalar_lea.vmem %s4, %s414
        %p416 = pneg %p183
        %p417 = pneg %p180
        %p418 = pneg %p211
        %p419 = pneg %p208
        %s420 = sand.u32 %s198, 1
        %s421 = scalar_lea.sflag [#allocation6], %s420
        %s422 = sand.u32 %s198, 1
        %s423 = smul.addr %s422, 32
        %s424 = scalar_lea.vmem [#allocation12], %s423
        %p425 = pneg %p239
        %p426 = pneg %p236
        %s427 = sand.u32 %s226, 1
        %s428 = scalar_lea.sflag [#allocation14], %s427
        %s429 = sand.u32 %s226, 1
        %s430 = smul.addr %s429, 8
        %s431 = scalar_lea.vmem [#allocation13], %s430
        %s432 = smul.u32 4, %s36
        %s433 = smul.u32 2, %s38
        %s434 = smul.u32 32, %s38
        %s435 = smul.u32 32, %s38
        %s436 = smul.u32 4, %s36
        %p437 = scmp.lt.s32.totalorder %s37, 2
        %s438 = scalar_select %p437, %s37, 2
        %s439 = scalar_lea.vmem %s4, %s438
        %s440 = smul.u32 4, %s36
        %p442 = scmp.eq.s32.totalorder %s38, 0
        // Predicated region
        $region57: #{tpu_custom_call.1} parent=39 // pred_check
          %p443 = pneg %p442
        $region58: #{tpu_custom_call.1} parent=39 // pred_check_branch
          %445 = sbr.rel (%p443) target = $region60
        $region59: #{tpu_custom_call.1} parent=39 // pred_region
          %446 = vst [vmem:[#allocation2] sm:$0xff] 0.0
          %447 = vst [vmem:[#allocation2 + $0x8] sm:$0xff] 0.0
          %448 = vst [vmem:[#allocation2 + $0x10] sm:$0xff] 0.0
          %449 = vst [vmem:[#allocation2 + $0x18] sm:$0xff] 0.0
          %450 = vst [vmem:[#allocation3] sm:$0xff] 0.0
          %451 = vst [vmem:[#allocation3 + $0x8] sm:$0xff] 0.0
          %452 = vst [vmem:[#allocation3 + $0x10] sm:$0xff] 0.0
          %453 = vst [vmem:[#allocation3 + $0x18] sm:$0xff] 0.0
          %454 = vst [vmem:[%s431] sm:$0xff] 0.0
        $region60: #{tpu_custom_call.1} parent=39 // pred_fallthru
          _
        %v455 = vld [vmem:[#allocation4] sm:$0xff]
        %v456 = vld [vmem:[#allocation4 + $0x8] sm:$0xff]
        %v457 = vld [vmem:[#allocation4 + $0x10] sm:$0xff]
        %v458 = vld [vmem:[#allocation4 + $0x18] sm:$0xff]
        %v459 = vld [vmem:[#allocation4 + $0x20] sm:$0xff]
        %v460 = vld [vmem:[#allocation4 + $0x28] sm:$0xff]
        %v461 = vld [vmem:[#allocation4 + $0x30] sm:$0xff]
        %v462 = vld [vmem:[#allocation4 + $0x38] sm:$0xff]
        %v463 = vld [vmem:[%s367] sm:$0xf]
        %v464 = vld [vmem:[%s367 + $0x4] sm:$0xf]
        %v465 = vld [vmem:[%s367 + $0x8] sm:$0xf]
        %v466 = vld [vmem:[%s367 + $0xc] sm:$0xf]
        %v467 = vld [vmem:[%s367 + $0x10] sm:$0xf]
        %v468 = vld [vmem:[%s367 + $0x14] sm:$0xf]
        %v469 = vld [vmem:[%s367 + $0x18] sm:$0xf]
        %v470 = vld [vmem:[%s367 + $0x1c] sm:$0xf]
        %v471 = vld [vmem:[%s367 + $0x20] sm:$0xf]
        %v472 = vld [vmem:[%s367 + $0x24] sm:$0xf]
        %v473 = vld [vmem:[%s367 + $0x28] sm:$0xf]
        %v474 = vld [vmem:[%s367 + $0x2c] sm:$0xf]
        %v475 = vld [vmem:[%s367 + $0x30] sm:$0xf]
        %v476 = vld [vmem:[%s367 + $0x34] sm:$0xf]
        %v477 = vld [vmem:[%s367 + $0x38] sm:$0xf]
        %v478 = vld [vmem:[%s367 + $0x3c] sm:$0xf]
        %v479 = vld [vmem:[%s367 + $0x40] sm:$0xf]
        %v480 = vld [vmem:[%s367 + $0x44] sm:$0xf]
        %v481 = vld [vmem:[%s367 + $0x48] sm:$0xf]
        %v482 = vld [vmem:[%s367 + $0x4c] sm:$0xf]
        %v483 = vld [vmem:[%s367 + $0x50] sm:$0xf]
        %v484 = vld [vmem:[%s367 + $0x54] sm:$0xf]
        %v485 = vld [vmem:[%s367 + $0x58] sm:$0xf]
        %v486 = vld [vmem:[%s367 + $0x5c] sm:$0xf]
        %v487 = vld [vmem:[%s367 + $0x60] sm:$0xf]
        %v488 = vld [vmem:[%s367 + $0x64] sm:$0xf]
        %v489 = vld [vmem:[%s367 + $0x68] sm:$0xf]
        %v490 = vld [vmem:[%s367 + $0x6c] sm:$0xf]
        %v491 = vld [vmem:[%s367 + $0x70] sm:$0xf]
        %v492 = vld [vmem:[%s367 + $0x74] sm:$0xf]
        %v493 = vld [vmem:[%s367 + $0x78] sm:$0xf]
        %v494 = vld [vmem:[%s367 + $0x7c] sm:$0xf]
        %v495 = vld [vmem:[%s376] sm:$0xf]
        %v496 = vld [vmem:[%s376 + $0x4] sm:$0xf]
        %v497 = vld [vmem:[%s376 + $0x8] sm:$0xf]
        %v498 = vld [vmem:[%s376 + $0xc] sm:$0xf]
        %v499 = vld [vmem:[%s376 + $0x10] sm:$0xf]
        %v500 = vld [vmem:[%s376 + $0x14] sm:$0xf]
        %v501 = vld [vmem:[%s376 + $0x18] sm:$0xf]
        %v502 = vld [vmem:[%s376 + $0x1c] sm:$0xf]
        %v503 = vld [vmem:[%s376 + $0x20] sm:$0xf]
        %v504 = vld [vmem:[%s376 + $0x24] sm:$0xf]
        %v505 = vld [vmem:[%s376 + $0x28] sm:$0xf]
        %v506 = vld [vmem:[%s376 + $0x2c] sm:$0xf]
        %v507 = vld [vmem:[%s376 + $0x30] sm:$0xf]
        %v508 = vld [vmem:[%s376 + $0x34] sm:$0xf]
        %v509 = vld [vmem:[%s376 + $0x38] sm:$0xf]
        %v510 = vld [vmem:[%s376 + $0x3c] sm:$0xf]
        %v511 = vld [vmem:[%s376 + $0x40] sm:$0xf]
        %v512 = vld [vmem:[%s376 + $0x44] sm:$0xf]
        %v513 = vld [vmem:[%s376 + $0x48] sm:$0xf]
        %v514 = vld [vmem:[%s376 + $0x4c] sm:$0xf]
        %v515 = vld [vmem:[%s376 + $0x50] sm:$0xf]
        %v516 = vld [vmem:[%s376 + $0x54] sm:$0xf]
        %v517 = vld [vmem:[%s376 + $0x58] sm:$0xf]
        %v518 = vld [vmem:[%s376 + $0x5c] sm:$0xf]
        %v519 = vld [vmem:[%s376 + $0x60] sm:$0xf]
        %v520 = vld [vmem:[%s376 + $0x64] sm:$0xf]
        %v521 = vld [vmem:[%s376 + $0x68] sm:$0xf]
        %v522 = vld [vmem:[%s376 + $0x6c] sm:$0xf]
        %v523 = vld [vmem:[%s376 + $0x70] sm:$0xf]
        %v524 = vld [vmem:[%s376 + $0x74] sm:$0xf]
        %v525 = vld [vmem:[%s376 + $0x78] sm:$0xf]
        %v526 = vld [vmem:[%s376 + $0x7c] sm:$0xf]
        %v527 = vld [vmem:[#allocation2] sm:$0xff]
        %v528 = vld [vmem:[#allocation2 + $0x8] sm:$0xff]
        %v529 = vld [vmem:[#allocation2 + $0x10] sm:$0xff]
        %v530 = vld [vmem:[#allocation2 + $0x18] sm:$0xff]
        %v531 = vpack.c.bf16 %v457, %v455
        %v532 = vpack.c.bf16 %v458, %v456
        %v533 = vpack.c.bf16 %v461, %v459
        %v534 = vpack.c.bf16 %v462, %v460
        %v567 = vunpack.c.l.b16 %v463
        %v568 = vunpack.c.l.b16 %v464
        %v569 = vunpack.c.l.b16 %v465
        %v570 = vunpack.c.l.b16 %v466
        %v571 = vunpack.c.l.b16 %v467
        %v572 = vunpack.c.l.b16 %v468
        %v573 = vunpack.c.l.b16 %v469
        %v574 = vunpack.c.l.b16 %v470
        %v575 = vunpack.c.l.b16 %v471
        %v576 = vunpack.c.l.b16 %v472
        %v577 = vunpack.c.l.b16 %v473
        %v578 = vunpack.c.l.b16 %v474
        %v579 = vunpack.c.l.b16 %v475
        %v580 = vunpack.c.l.b16 %v476
        %v581 = vunpack.c.l.b16 %v477
        %v582 = vunpack.c.l.b16 %v478
        %v583 = vunpack.c.l.b16 %v479
        %v584 = vunpack.c.l.b16 %v480
        %v585 = vunpack.c.l.b16 %v481
        %v586 = vunpack.c.l.b16 %v482
        %v587 = vunpack.c.l.b16 %v483
        %v588 = vunpack.c.l.b16 %v484
        %v589 = vunpack.c.l.b16 %v485
        %v590 = vunpack.c.l.b16 %v486
        %v591 = vunpack.c.l.b16 %v487
        %v592 = vunpack.c.l.b16 %v488
        %v593 = vunpack.c.l.b16 %v489
        %v594 = vunpack.c.l.b16 %v490
        %v595 = vunpack.c.l.b16 %v491
        %v596 = vunpack.c.l.b16 %v492
        %v597 = vunpack.c.l.b16 %v493
        %v598 = vunpack.c.l.b16 %v494
        %v599 = vpack.c.b16 %v568, %v567
        %v600 = vpack.c.b16 %v570, %v569
        %v601 = vpack.c.b16 %v572, %v571
        %v602 = vpack.c.b16 %v574, %v573
        %v603 = vpack.c.b16 %v576, %v575
        %v604 = vpack.c.b16 %v578, %v577
        %v605 = vpack.c.b16 %v580, %v579
        %v606 = vpack.c.b16 %v582, %v581
        %v607 = vpack.c.b16 %v584, %v583
        %v608 = vpack.c.b16 %v586, %v585
        %v609 = vpack.c.b16 %v588, %v587
        %v610 = vpack.c.b16 %v590, %v589
        %v611 = vpack.c.b16 %v592, %v591
        %v612 = vpack.c.b16 %v594, %v593
        %v613 = vpack.c.b16 %v596, %v595
        %v614 = vpack.c.b16 %v598, %v597
        %631 = vmatprep.subr.bf16.mxu0 0
        %632 = vmatpush1.bf16.msra.mxu0 %v599
        %633 = vmatprep.subr.bf16.mxu0 0
        %634 = vmatpush1.bf16.msra.mxu0 %v600
        %635 = vmatprep.subr.bf16.mxu0 0
        %636 = vmatpush1.bf16.msra.mxu0 %v601
        %637 = vmatprep.subr.bf16.mxu0 0
        %638 = vmatpush1.bf16.msra.mxu0 %v602
        %639 = vmatprep.subr.bf16.mxu0 0
        %640 = vmatpush1.bf16.msra.mxu0 %v603
        %641 = vmatprep.subr.bf16.mxu0 0
        %642 = vmatpush1.bf16.msra.mxu0 %v604
        %643 = vmatprep.subr.bf16.mxu0 0
        %644 = vmatpush1.bf16.msra.mxu0 %v605
        %645 = vmatprep.subr.bf16.mxu0 0
        %646 = vmatpush1.bf16.msra.mxu0 %v606
        %647 = vmatprep.subr.bf16.mxu0 0
        %648 = vmatpush1.bf16.msra.mxu0 %v607
        %649 = vmatprep.subr.bf16.mxu0 0
        %650 = vmatpush1.bf16.msra.mxu0 %v608
        %651 = vmatprep.subr.bf16.mxu0 0
        %652 = vmatpush1.bf16.msra.mxu0 %v609
        %653 = vmatprep.subr.bf16.mxu0 0
        %654 = vmatpush1.bf16.msra.mxu0 %v610
        %655 = vmatprep.subr.bf16.mxu0 0
        %656 = vmatpush1.bf16.msra.mxu0 %v611
        %657 = vmatprep.subr.bf16.mxu0 0
        %658 = vmatpush1.bf16.msra.mxu0 %v612
        %659 = vmatprep.subr.bf16.mxu0 0
        %660 = vmatpush1.bf16.msra.mxu0 %v613
        %661 = vmatprep.subr.bf16.mxu0 0
        %662 = vmatpush1.bf16.msra.mxu0 %v614
        %663 = vmatprep.mubr.bf16.mxu0 %v532
        %664 = vmatmul.mubr.bf16.gmra.mrb[0].mxu0 %v531
        %v665 = vpop.f32.mrb[0].mxu0
        %v666 = vadd.f32 0.0, %v665
        %v667 = vpop.f32.mrb[0].mxu0
        %v668 = vpop.f32.mrb[0].mxu0
        %v669 = vadd.f32 0.0, %v668
        %v670 = vpop.f32.mrb[0].mxu0
        %671 = vmatprep.mubr.bf16.mxu0 %v534
        %672 = vmatmul.mubr.bf16.gmra.mrb[0].mxu0 %v533
        %v673 = vpop.f32.mrb[0].mxu0
        %v674 = vadd.f32 0.0, %v673
        %v675 = vpop.f32.mrb[0].mxu0
        %v676 = vpop.f32.mrb[0].mxu0
        %v677 = vadd.f32 0.0, %v676
        %v678 = vpop.f32.mrb[0].mxu0
        %679 = vdwg.mxu0
        %v680 = vadd.f32 %v527, %v666
        %v681 = vadd.f32 %v528, %v669
        %v682 = vadd.f32 %v529, %v674
        %v683 = vadd.f32 %v530, %v677
        %684 = vst [vmem:[#allocation2] sm:$0xff] %v680
        %685 = vst [vmem:[#allocation2 + $0x8] sm:$0xff] %v681
        %686 = vst [vmem:[#allocation2 + $0x10] sm:$0xff] %v682
        %687 = vst [vmem:[#allocation2 + $0x18] sm:$0xff] %v683
        %v688 = vld [vmem:[#allocation3] sm:$0xff]
        %v689 = vld [vmem:[#allocation3 + $0x8] sm:$0xff]
        %v690 = vld [vmem:[#allocation3 + $0x10] sm:$0xff]
        %v691 = vld [vmem:[#allocation3 + $0x18] sm:$0xff]
        %v692 = vmul.f32 %v455, %v455
        %v693 = vmul.f32 %v456, %v456
        %v694 = vmul.f32 %v457, %v457
        %v695 = vmul.f32 %v458, %v458
        %v696 = vmul.f32 %v459, %v459
        %v697 = vmul.f32 %v460, %v460
        %v698 = vmul.f32 %v461, %v461
        %v699 = vmul.f32 %v462, %v462
        %v700 = vpack.c.bf16 %v694, %v692
        %v701 = vpack.c.bf16 %v695, %v693
        %v702 = vpack.c.bf16 %v698, %v696
        %v703 = vpack.c.bf16 %v699, %v697
        %v736 = vunpack.c.l.b16 %v495
        %v737 = vunpack.c.l.b16 %v496
        %v738 = vunpack.c.l.b16 %v497
        %v739 = vunpack.c.l.b16 %v498
        %v740 = vunpack.c.l.b16 %v499
        %v741 = vunpack.c.l.b16 %v500
        %v742 = vunpack.c.l.b16 %v501
        %v743 = vunpack.c.l.b16 %v502
        %v744 = vunpack.c.l.b16 %v503
        %v745 = vunpack.c.l.b16 %v504
        %v746 = vunpack.c.l.b16 %v505
        %v747 = vunpack.c.l.b16 %v506
        %v748 = vunpack.c.l.b16 %v507
        %v749 = vunpack.c.l.b16 %v508
        %v750 = vunpack.c.l.b16 %v509
        %v751 = vunpack.c.l.b16 %v510
        %v752 = vunpack.c.l.b16 %v511
        %v753 = vunpack.c.l.b16 %v512
        %v754 = vunpack.c.l.b16 %v513
        %v755 = vunpack.c.l.b16 %v514
        %v756 = vunpack.c.l.b16 %v515
        %v757 = vunpack.c.l.b16 %v516
        %v758 = vunpack.c.l.b16 %v517
        %v759 = vunpack.c.l.b16 %v518
        %v760 = vunpack.c.l.b16 %v519
        %v761 = vunpack.c.l.b16 %v520
        %v762 = vunpack.c.l.b16 %v521
        %v763 = vunpack.c.l.b16 %v522
        %v764 = vunpack.c.l.b16 %v523
        %v765 = vunpack.c.l.b16 %v524
        %v766 = vunpack.c.l.b16 %v525
        %v767 = vunpack.c.l.b16 %v526
        %v768 = vpack.c.b16 %v737, %v736
        %v769 = vpack.c.b16 %v739, %v738
        %v770 = vpack.c.b16 %v741, %v740
        %v771 = vpack.c.b16 %v743, %v742
        %v772 = vpack.c.b16 %v745, %v744
        %v773 = vpack.c.b16 %v747, %v746
        %v774 = vpack.c.b16 %v749, %v748
        %v775 = vpack.c.b16 %v751, %v750
        %v776 = vpack.c.b16 %v753, %v752
        %v777 = vpack.c.b16 %v755, %v754
        %v778 = vpack.c.b16 %v757, %v756
        %v779 = vpack.c.b16 %v759, %v758
        %v780 = vpack.c.b16 %v761, %v760
        %v781 = vpack.c.b16 %v763, %v762
        %v782 = vpack.c.b16 %v765, %v764
        %v783 = vpack.c.b16 %v767, %v766
        %800 = vmatprep.subr.bf16.mxu0 0
        %801 = vmatpush1.bf16.msra.mxu0 %v768
        %802 = vmatprep.subr.bf16.mxu0 0
        %803 = vmatpush1.bf16.msra.mxu0 %v769
        %804 = vmatprep.subr.bf16.mxu0 0
        %805 = vmatpush1.bf16.msra.mxu0 %v770
        %806 = vmatprep.subr.bf16.mxu0 0
        %807 = vmatpush1.bf16.msra.mxu0 %v771
        %808 = vmatprep.subr.bf16.mxu0 0
        %809 = vmatpush1.bf16.msra.mxu0 %v772
        %810 = vmatprep.subr.bf16.mxu0 0
        %811 = vmatpush1.bf16.msra.mxu0 %v773
        %812 = vmatprep.subr.bf16.mxu0 0
        %813 = vmatpush1.bf16.msra.mxu0 %v774
        %814 = vmatprep.subr.bf16.mxu0 0
        %815 = vmatpush1.bf16.msra.mxu0 %v775
        %816 = vmatprep.subr.bf16.mxu0 0
        %817 = vmatpush1.bf16.msra.mxu0 %v776
        %818 = vmatprep.subr.bf16.mxu0 0
        %819 = vmatpush1.bf16.msra.mxu0 %v777
        %820 = vmatprep.subr.bf16.mxu0 0
        %821 = vmatpush1.bf16.msra.mxu0 %v778
        %822 = vmatprep.subr.bf16.mxu0 0
        %823 = vmatpush1.bf16.msra.mxu0 %v779
        %824 = vmatprep.subr.bf16.mxu0 0
        %825 = vmatpush1.bf16.msra.mxu0 %v780
        %826 = vmatprep.subr.bf16.mxu0 0
        %827 = vmatpush1.bf16.msra.mxu0 %v781
        %828 = vmatprep.subr.bf16.mxu0 0
        %829 = vmatpush1.bf16.msra.mxu0 %v782
        %830 = vmatprep.subr.bf16.mxu0 0
        %831 = vmatpush1.bf16.msra.mxu0 %v783
        %832 = vmatprep.mubr.bf16.mxu0 %v701
        %833 = vmatmul.mubr.bf16.gmra.mrb[0].mxu0 %v700
        %v834 = vpop.f32.mrb[0].mxu0
        %v835 = vadd.f32 0.0, %v834
        %v836 = vpop.f32.mrb[0].mxu0
        %v837 = vpop.f32.mrb[0].mxu0
        %v838 = vadd.f32 0.0, %v837
        %v839 = vpop.f32.mrb[0].mxu0
        %840 = vmatprep.mubr.bf16.mxu0 %v703
        %841 = vmatmul.mubr.bf16.gmra.mrb[0].mxu0 %v702
        %v842 = vpop.f32.mrb[0].mxu0
        %v843 = vadd.f32 0.0, %v842
        %v844 = vpop.f32.mrb[0].mxu0
        %v845 = vpop.f32.mrb[0].mxu0
        %v846 = vadd.f32 0.0, %v845
        %v847 = vpop.f32.mrb[0].mxu0
        %848 = vdwg.mxu0
        %v849 = vadd.f32 %v688, %v835
        %v850 = vadd.f32 %v689, %v838
        %v851 = vadd.f32 %v690, %v843
        %v852 = vadd.f32 %v691, %v846
        %853 = vst [vmem:[#allocation3] sm:$0xff] %v849
        %854 = vst [vmem:[#allocation3 + $0x8] sm:$0xff] %v850
        %855 = vst [vmem:[#allocation3 + $0x10] sm:$0xff] %v851
        %856 = vst [vmem:[#allocation3 + $0x18] sm:$0xff] %v852
        %p857 = scmp.eq.s32.totalorder %s36, 0
        // Predicated region
        $region61: #{tpu_custom_call.1} parent=39 // pred_check
          %p858 = pneg %p857
        $region62: #{tpu_custom_call.1} parent=39 // pred_check_branch
          %860 = sbr.rel (%p858) target = $region64
        $region63: #{tpu_custom_call.1} parent=39 // pred_region
          %v861 = vunpack.c.l.bf16 %v463
          %v862 = vunpack.c.l.bf16 %v464
          %v863 = vunpack.c.l.bf16 %v465
          %v864 = vunpack.c.l.bf16 %v466
          %v865 = vunpack.c.l.bf16 %v467
          %v866 = vunpack.c.l.bf16 %v468
          %v867 = vunpack.c.l.bf16 %v469
          %v868 = vunpack.c.l.bf16 %v470
          %v869 = vunpack.c.l.bf16 %v471
          %v870 = vunpack.c.l.bf16 %v472
          %v871 = vunpack.c.l.bf16 %v473
          %v872 = vunpack.c.l.bf16 %v474
          %v873 = vunpack.c.l.bf16 %v475
          %v874 = vunpack.c.l.bf16 %v476
          %v875 = vunpack.c.l.bf16 %v477
          %v876 = vunpack.c.l.bf16 %v478
          %v877 = vunpack.c.l.bf16 %v479
          %v878 = vunpack.c.l.bf16 %v480
          %v879 = vunpack.c.l.bf16 %v481
          %v880 = vunpack.c.l.bf16 %v482
          %v881 = vunpack.c.l.bf16 %v483
          %v882 = vunpack.c.l.bf16 %v484
          %v883 = vunpack.c.l.bf16 %v485
          %v884 = vunpack.c.l.bf16 %v486
          %v885 = vunpack.c.l.bf16 %v487
          %v886 = vunpack.c.l.bf16 %v488
          %v887 = vunpack.c.l.bf16 %v489
          %v888 = vunpack.c.l.bf16 %v490
          %v889 = vunpack.c.l.bf16 %v491
          %v890 = vunpack.c.l.bf16 %v492
          %v891 = vunpack.c.l.bf16 %v493
          %v892 = vunpack.c.l.bf16 %v494
          %v893 = vunpack.c.l.bf16 %v495
          %v894 = vunpack.c.l.bf16 %v496
          %v895 = vunpack.c.l.bf16 %v497
          %v896 = vunpack.c.l.bf16 %v498
          %v897 = vunpack.c.l.bf16 %v499
          %v898 = vunpack.c.l.bf16 %v500
          %v899 = vunpack.c.l.bf16 %v501
          %v900 = vunpack.c.l.bf16 %v502
          %v901 = vunpack.c.l.bf16 %v503
          %v902 = vunpack.c.l.bf16 %v504
          %v903 = vunpack.c.l.bf16 %v505
          %v904 = vunpack.c.l.bf16 %v506
          %v905 = vunpack.c.l.bf16 %v507
          %v906 = vunpack.c.l.bf16 %v508
          %v907 = vunpack.c.l.bf16 %v509
          %v908 = vunpack.c.l.bf16 %v510
          %v909 = vunpack.c.l.bf16 %v511
          %v910 = vunpack.c.l.bf16 %v512
          %v911 = vunpack.c.l.bf16 %v513
          %v912 = vunpack.c.l.bf16 %v514
          %v913 = vunpack.c.l.bf16 %v515
          %v914 = vunpack.c.l.bf16 %v516
          %v915 = vunpack.c.l.bf16 %v517
          %v916 = vunpack.c.l.bf16 %v518
          %v917 = vunpack.c.l.bf16 %v519
          %v918 = vunpack.c.l.bf16 %v520
          %v919 = vunpack.c.l.bf16 %v521
          %v920 = vunpack.c.l.bf16 %v522
          %v921 = vunpack.c.l.bf16 %v523
          %v922 = vunpack.c.l.bf16 %v524
          %v923 = vunpack.c.l.bf16 %v525
          %v924 = vunpack.c.l.bf16 %v526
          %v925 = vmul.f32 %v861, %v861
          %v926 = vmul.f32 %v862, %v862
          %v927 = vmul.f32 %v863, %v863
          %v928 = vmul.f32 %v864, %v864
          %v929 = vmul.f32 %v865, %v865
          %v930 = vmul.f32 %v866, %v866
          %v931 = vmul.f32 %v867, %v867
          %v932 = vmul.f32 %v868, %v868
          %v933 = vmul.f32 %v869, %v869
          %v934 = vmul.f32 %v870, %v870
          %v935 = vmul.f32 %v871, %v871
          %v936 = vmul.f32 %v872, %v872
          %v937 = vmul.f32 %v873, %v873
          %v938 = vmul.f32 %v874, %v874
          %v939 = vmul.f32 %v875, %v875
          %v940 = vmul.f32 %v876, %v876
          %v941 = vmul.f32 %v877, %v877
          %v942 = vmul.f32 %v878, %v878
          %v943 = vmul.f32 %v879, %v879
          %v944 = vmul.f32 %v880, %v880
          %v945 = vmul.f32 %v881, %v881
          %v946 = vmul.f32 %v882, %v882
          %v947 = vmul.f32 %v883, %v883
          %v948 = vmul.f32 %v884, %v884
          %v949 = vmul.f32 %v885, %v885
          %v950 = vmul.f32 %v886, %v886
          %v951 = vmul.f32 %v887, %v887
          %v952 = vmul.f32 %v888, %v888
          %v953 = vmul.f32 %v889, %v889
          %v954 = vmul.f32 %v890, %v890
          %v955 = vmul.f32 %v891, %v891
          %v956 = vmul.f32 %v892, %v892
          %v957 = vadd.f32 %v893, %v925
          %v958 = vadd.f32 %v894, %v926
          %v959 = vadd.f32 %v895, %v927
          %v960 = vadd.f32 %v896, %v928
          %v961 = vadd.f32 %v897, %v929
          %v962 = vadd.f32 %v898, %v930
          %v963 = vadd.f32 %v899, %v931
          %v964 = vadd.f32 %v900, %v932
          %v965 = vadd.f32 %v901, %v933
          %v966 = vadd.f32 %v902, %v934
          %v967 = vadd.f32 %v903, %v935
          %v968 = vadd.f32 %v904, %v936
          %v969 = vadd.f32 %v905, %v937
          %v970 = vadd.f32 %v906, %v938
          %v971 = vadd.f32 %v907, %v939
          %v972 = vadd.f32 %v908, %v940
          %v973 = vadd.f32 %v909, %v941
          %v974 = vadd.f32 %v910, %v942
          %v975 = vadd.f32 %v911, %v943
          %v976 = vadd.f32 %v912, %v944
          %v977 = vadd.f32 %v913, %v945
          %v978 = vadd.f32 %v914, %v946
          %v979 = vadd.f32 %v915, %v947
          %v980 = vadd.f32 %v916, %v948
          %v981 = vadd.f32 %v917, %v949
          %v982 = vadd.f32 %v918, %v950
          %v983 = vadd.f32 %v919, %v951
          %v984 = vadd.f32 %v920, %v952
          %v985 = vadd.f32 %v921, %v953
          %v986 = vadd.f32 %v922, %v954
          %v987 = vadd.f32 %v923, %v955
          %v988 = vadd.f32 %v924, %v956
          %v989 = vmul.f32 %v957, 10000.0
          %v990 = vmul.f32 %v958, 10000.0
          %v991 = vmul.f32 %v959, 10000.0
          %v992 = vmul.f32 %v960, 10000.0
          %v993 = vmul.f32 %v961, 10000.0
          %v994 = vmul.f32 %v962, 10000.0
          %v995 = vmul.f32 %v963, 10000.0
          %v996 = vmul.f32 %v964, 10000.0
          %v997 = vmul.f32 %v965, 10000.0
          %v998 = vmul.f32 %v966, 10000.0
          %v999 = vmul.f32 %v967, 10000.0
          %v1000 = vmul.f32 %v968, 10000.0
          %v1001 = vmul.f32 %v969, 10000.0
          %v1002 = vmul.f32 %v970, 10000.0
          %v1003 = vmul.f32 %v971, 10000.0
          %v1004 = vmul.f32 %v972, 10000.0
          %v1005 = vmul.f32 %v973, 10000.0
          %v1006 = vmul.f32 %v974, 10000.0
          %v1007 = vmul.f32 %v975, 10000.0
          %v1008 = vmul.f32 %v976, 10000.0
          %v1009 = vmul.f32 %v977, 10000.0
          %v1010 = vmul.f32 %v978, 10000.0
          %v1011 = vmul.f32 %v979, 10000.0
          %v1012 = vmul.f32 %v980, 10000.0
          %v1013 = vmul.f32 %v981, 10000.0
          %v1014 = vmul.f32 %v982, 10000.0
          %v1015 = vmul.f32 %v983, 10000.0
          %v1016 = vmul.f32 %v984, 10000.0
          %v1017 = vmul.f32 %v985, 10000.0
          %v1018 = vmul.f32 %v986, 10000.0
          %v1019 = vmul.f32 %v987, 10000.0
          %v1020 = vmul.f32 %v988, 10000.0
          %v1021 = vlog2.pop %v893
          %v1022 = vmul.f32 %v1021, 0.6931472
          %v1023 = vlog2.pop %v894
          %v1024 = vmul.f32 %v1023, 0.6931472
          %v1025 = vlog2.pop %v895
          %v1026 = vmul.f32 %v1025, 0.6931472
          %v1027 = vlog2.pop %v896
          %v1028 = vmul.f32 %v1027, 0.6931472
          %v1029 = vlog2.pop %v897
          %v1030 = vmul.f32 %v1029, 0.6931472
          %v1031 = vlog2.pop %v898
          %v1032 = vmul.f32 %v1031, 0.6931472
          %v1033 = vlog2.pop %v899
          %v1034 = vmul.f32 %v1033, 0.6931472
          %v1035 = vlog2.pop %v900
          %v1036 = vmul.f32 %v1035, 0.6931472
          %v1037 = vlog2.pop %v901
          %v1038 = vmul.f32 %v1037, 0.6931472
          %v1039 = vlog2.pop %v902
          %v1040 = vmul.f32 %v1039, 0.6931472
          %v1041 = vlog2.pop %v903
          %v1042 = vmul.f32 %v1041, 0.6931472
          %v1043 = vlog2.pop %v904
          %v1044 = vmul.f32 %v1043, 0.6931472
          %v1045 = vlog2.pop %v905
          %v1046 = vmul.f32 %v1045, 0.6931472
          %v1047 = vlog2.pop %v906
          %v1048 = vmul.f32 %v1047, 0.6931472
          %v1049 = vlog2.pop %v907
          %v1050 = vmul.f32 %v1049, 0.6931472
          %v1051 = vlog2.pop %v908
          %v1052 = vmul.f32 %v1051, 0.6931472
          %v1053 = vlog2.pop %v909
          %v1054 = vmul.f32 %v1053, 0.6931472
          %v1055 = vlog2.pop %v910
          %v1056 = vmul.f32 %v1055, 0.6931472
          %v1057 = vlog2.pop %v911
          %v1058 = vmul.f32 %v1057, 0.6931472
          %v1059 = vlog2.pop %v912
          %v1060 = vmul.f32 %v1059, 0.6931472
          %v1061 = vlog2.pop %v913
          %v1062 = vmul.f32 %v1061, 0.6931472
          %v1063 = vlog2.pop %v914
          %v1064 = vmul.f32 %v1063, 0.6931472
          %v1065 = vlog2.pop %v915
          %v1066 = vmul.f32 %v1065, 0.6931472
          %v1067 = vlog2.pop %v916
          %v1068 = vmul.f32 %v1067, 0.6931472
          %v1069 = vlog2.pop %v917
          %v1070 = vmul.f32 %v1069, 0.6931472
          %v1071 = vlog2.pop %v918
          %v1072 = vmul.f32 %v1071, 0.6931472
          %v1073 = vlog2.pop %v919
          %v1074 = vmul.f32 %v1073, 0.6931472
          %v1075 = vlog2.pop %v920
          %v1076 = vmul.f32 %v1075, 0.6931472
          %v1077 = vlog2.pop %v921
          %v1078 = vmul.f32 %v1077, 0.6931472
          %v1079 = vlog2.pop %v922
          %v1080 = vmul.f32 %v1079, 0.6931472
          %v1081 = vlog2.pop %v923
          %v1082 = vmul.f32 %v1081, 0.6931472
          %v1083 = vlog2.pop %v924
          %v1084 = vmul.f32 %v1083, 0.6931472
          %v1085 = vsub.f32 %v989, %v1022
          %v1086 = vsub.f32 %v990, %v1024
          %v1087 = vsub.f32 %v991, %v1026
          %v1088 = vsub.f32 %v992, %v1028
          %v1089 = vsub.f32 %v993, %v1030
          %v1090 = vsub.f32 %v994, %v1032
          %v1091 = vsub.f32 %v995, %v1034
          %v1092 = vsub.f32 %v996, %v1036
          %v1093 = vsub.f32 %v997, %v1038
          %v1094 = vsub.f32 %v998, %v1040
          %v1095 = vsub.f32 %v999, %v1042
          %v1096 = vsub.f32 %v1000, %v1044
          %v1097 = vsub.f32 %v1001, %v1046
          %v1098 = vsub.f32 %v1002, %v1048
          %v1099 = vsub.f32 %v1003, %v1050
          %v1100 = vsub.f32 %v1004, %v1052
          %v1101 = vsub.f32 %v1005, %v1054
          %v1102 = vsub.f32 %v1006, %v1056
          %v1103 = vsub.f32 %v1007, %v1058
          %v1104 = vsub.f32 %v1008, %v1060
          %v1105 = vsub.f32 %v1009, %v1062
          %v1106 = vsub.f32 %v1010, %v1064
          %v1107 = vsub.f32 %v1011, %v1066
          %v1108 = vsub.f32 %v1012, %v1068
          %v1109 = vsub.f32 %v1013, %v1070
          %v1110 = vsub.f32 %v1014, %v1072
          %v1111 = vsub.f32 %v1015, %v1074
          %v1112 = vsub.f32 %v1016, %v1076
          %v1113 = vsub.f32 %v1017, %v1078
          %v1114 = vsub.f32 %v1018, %v1080
          %v1115 = vsub.f32 %v1019, %v1082
          %v1116 = vsub.f32 %v1020, %v1084
          %v1117 = vadd.f32 %v1085, -10.2103405
          %v1118 = vadd.f32 %v1086, -10.2103405
          %v1119 = vadd.f32 %v1087, -10.2103405
          %v1120 = vadd.f32 %v1088, -10.2103405
          %v1121 = vadd.f32 %v1089, -10.2103405
          %v1122 = vadd.f32 %v1090, -10.2103405
          %v1123 = vadd.f32 %v1091, -10.2103405
          %v1124 = vadd.f32 %v1092, -10.2103405
          %v1125 = vadd.f32 %v1093, -10.2103405
          %v1126 = vadd.f32 %v1094, -10.2103405
          %v1127 = vadd.f32 %v1095, -10.2103405
          %v1128 = vadd.f32 %v1096, -10.2103405
          %v1129 = vadd.f32 %v1097, -10.2103405
          %v1130 = vadd.f32 %v1098, -10.2103405
          %v1131 = vadd.f32 %v1099, -10.2103405
          %v1132 = vadd.f32 %v1100, -10.2103405
          %v1133 = vadd.f32 %v1101, -10.2103405
          %v1134 = vadd.f32 %v1102, -10.2103405
          %v1135 = vadd.f32 %v1103, -10.2103405
          %v1136 = vadd.f32 %v1104, -10.2103405
          %v1137 = vadd.f32 %v1105, -10.2103405
          %v1138 = vadd.f32 %v1106, -10.2103405
          %v1139 = vadd.f32 %v1107, -10.2103405
          %v1140 = vadd.f32 %v1108, -10.2103405
          %v1141 = vadd.f32 %v1109, -10.2103405
          %v1142 = vadd.f32 %v1110, -10.2103405
          %v1143 = vadd.f32 %v1111, -10.2103405
          %v1144 = vadd.f32 %v1112, -10.2103405
          %v1145 = vadd.f32 %v1113, -10.2103405
          %v1146 = vadd.f32 %v1114, -10.2103405
          %v1147 = vadd.f32 %v1115, -10.2103405
          %v1148 = vadd.f32 %v1116, -10.2103405
          %v1149 = vld [vmem:[%s431] sm:$0xff]
          %v1150 = vadd.f32 %v1117, %v1118
          %v1151 = vadd.f32 %v1150, %v1119
          %v1152 = vadd.f32 %v1151, %v1120
          %v1153 = vadd.f32 %v1152, %v1121
          %v1154 = vadd.f32 %v1153, %v1122
          %v1155 = vadd.f32 %v1154, %v1123
          %v1156 = vadd.f32 %v1155, %v1124
          %v1157 = vadd.f32 %v1156, %v1125
          %v1158 = vadd.f32 %v1157, %v1126
          %v1159 = vadd.f32 %v1158, %v1127
          %v1160 = vadd.f32 %v1159, %v1128
          %v1161 = vadd.f32 %v1160, %v1129
          %v1162 = vadd.f32 %v1161, %v1130
          %v1163 = vadd.f32 %v1162, %v1131
          %v1164 = vadd.f32 %v1163, %v1132
          %v1165 = vadd.f32 %v1164, %v1133
          %v1166 = vadd.f32 %v1165, %v1134
          %v1167 = vadd.f32 %v1166, %v1135
          %v1168 = vadd.f32 %v1167, %v1136
          %v1169 = vadd.f32 %v1168, %v1137
          %v1170 = vadd.f32 %v1169, %v1138
          %v1171 = vadd.f32 %v1170, %v1139
          %v1172 = vadd.f32 %v1171, %v1140
          %v1173 = vadd.f32 %v1172, %v1141
          %v1174 = vadd.f32 %v1173, %v1142
          %v1175 = vadd.f32 %v1174, %v1143
          %v1176 = vadd.f32 %v1175, %v1144
          %v1177 = vadd.f32 %v1176, %v1145
          %v1178 = vadd.f32 %v1177, %v1146
          %v1179 = vadd.f32 %v1178, %v1147
          %v1180 = vadd.f32 %v1179, %v1148
          %v1181 = vadd.f32 %v1149, %v1180
          %1182 = vst [vmem:[%s431] sm:$0xff] %v1181
        $region64: #{tpu_custom_call.1} parent=39 // pred_fallthru
          _
        // Predicated region
        $region65: #{tpu_custom_call.1} parent=39 // pred_check
          %p1183 = pneg %p442
        $region66: #{tpu_custom_call.1} parent=39 // pred_check_branch
          %1185 = sbr.rel (%p1183) target = $region68
        $region67: #{tpu_custom_call.1} parent=39 // pred_region
          %v1186 = vld [vmem:[#allocation2] sm:$0xff]
          %v1187 = vld [vmem:[#allocation2 + $0x8] sm:$0xff]
          %v1188 = vld [vmem:[#allocation2 + $0x10] sm:$0xff]
          %v1189 = vld [vmem:[#allocation2 + $0x18] sm:$0xff]
          %v1190 = vld [vmem:[#allocation3] sm:$0xff]
          %v1191 = vld [vmem:[#allocation3 + $0x8] sm:$0xff]
          %v1192 = vld [vmem:[#allocation3 + $0x10] sm:$0xff]
          %v1193 = vld [vmem:[#allocation3 + $0x18] sm:$0xff]
          %v1194 = vrsqrt.pop %v1190
          %v1195 = vmul.f32 %v1190, %v1194
          %vm1196 = vcmp.eq.f32.partialorder %v1190, inf
          %v1197 = vsel %vm1196, %v1190, %v1195
          %vm1198 = vcmp.eq.f32.partialorder %v1190, 0.0
          %v1199 = vand.u32 %v1190, 2147483648
          %v1200 = vsel %vm1198, %v1199, %v1197
          %v1201 = vrsqrt.pop %v1191
          %v1202 = vmul.f32 %v1191, %v1201
          %vm1203 = vcmp.eq.f32.partialorder %v1191, inf
          %v1204 = vsel %vm1203, %v1191, %v1202
          %vm1205 = vcmp.eq.f32.partialorder %v1191, 0.0
          %v1206 = vand.u32 %v1191, 2147483648
          %v1207 = vsel %vm1205, %v1206, %v1204
          %v1208 = vrsqrt.pop %v1192
          %v1209 = vmul.f32 %v1192, %v1208
          %vm1210 = vcmp.eq.f32.partialorder %v1192, inf
          %v1211 = vsel %vm1210, %v1192, %v1209
          %vm1212 = vcmp.eq.f32.partialorder %v1192, 0.0
          %v1213 = vand.u32 %v1192, 2147483648
          %v1214 = vsel %vm1212, %v1213, %v1211
          %v1215 = vrsqrt.pop %v1193
          %v1216 = vmul.f32 %v1193, %v1215
          %vm1217 = vcmp.eq.f32.partialorder %v1193, inf
          %v1218 = vsel %vm1217, %v1193, %v1216
          %vm1219 = vcmp.eq.f32.partialorder %v1193, 0.0
          %v1220 = vand.u32 %v1193, 2147483648
          %v1221 = vsel %vm1219, %v1220, %v1218
          %v1222 = vld [vmem:[%s385] sm:$0xf]
          %v1223 = vld [vmem:[%s385 + $0x4] sm:$0xf]
          %v1224 = vld [vmem:[%s385 + $0x8] sm:$0xf]
          %v1225 = vld [vmem:[%s385 + $0xc] sm:$0xf]
          %v1226 = vunpack.c.l.bf16 %v1222
          %v1227 = vunpack.c.l.bf16 %v1223
          %v1228 = vunpack.c.l.bf16 %v1224
          %v1229 = vunpack.c.l.bf16 %v1225
          %v1230 = vmul.f32 %v1200, %v1226
          %v1231 = vmul.f32 %v1207, %v1227
          %v1232 = vmul.f32 %v1214, %v1228
          %v1233 = vmul.f32 %v1221, %v1229
          %v1234 = vadd.f32 %v1186, %v1230
          %v1235 = vadd.f32 %v1187, %v1231
          %v1236 = vadd.f32 %v1188, %v1232
          %v1237 = vadd.f32 %v1189, %v1233
          %v1238 = vld [vmem:[%s439] sm:$0x1]
          %v1240 = vlaneseq
          %v1241 = vshrl.u32 %v1240, 7
          %v1242 = vsub.s32 0, %v1241
          %v1243 = vrot.slane %v1238, %v1242
          %v1245 = vadd.f32 %v1234, %v1243
          %v1246 = vadd.f32 %v1235, %v1243
          %v1247 = vadd.f32 %v1236, %v1243
          %v1248 = vadd.f32 %v1237, %v1243
          %1249 = vst [vmem:[%s424] sm:$0xff] %v1245
          %1250 = vst [vmem:[%s424 + $0x8] sm:$0xff] %v1246
          %1251 = vst [vmem:[%s424 + $0x10] sm:$0xff] %v1247
          %1252 = vst [vmem:[%s424 + $0x18] sm:$0xff] %v1248
        $region68: #{tpu_custom_call.1} parent=39 // pred_fallthru
          _
        %s1253 = sand.u32 %s198, 1
        %s1254 = scalar_lea.sflag [#allocation6], %s1253
        %s1255 = sand.u32 %s198, 1
        %s1256 = smul.addr %s1255, 32
        %s1257 = scalar_lea.vmem [#allocation12], %s1256
        %s1258 = sand.u32 %s226, 1
        %s1259 = scalar_lea.sflag [#allocation14], %s1258
        %s1260 = sand.u32 %s226, 1
        %s1261 = smul.addr %s1260, 8
        %s1262 = scalar_lea.vmem [#allocation13], %s1261
        // Predicated region
        $region69: #{tpu_custom_call.1} parent=39 // pred_check
          %p1263 = pneg %p208
        $region70: #{tpu_custom_call.1} parent=39 // pred_check_branch
          %1265 = sbr.rel (%p1263) target = $region72
        $region71: #{tpu_custom_call.1} parent=39 // pred_region
          %s1266 = smul.u32 4, %s36
          %s1268 = ssub.s32 512, 512
          %1269 = vsyncadd %s1254, %s1268
          %s1270 = smul.addr %s1266, 3
          %s1271 = sadd.s32 %s37, %s1270
          %s1272 = smul.addr %s1271, 128
          %s1273 = scalar_lea.hbm %s5, %s1272
          %s1274 = sshll.u32 %s1257, 4
          %s1275 = int_to_ptr.vmem [resolvable:$true] %s1274
          %1280 = dma.vmem_to_hbm [thread:$0]  %s1275, 512, %s1273, %s1254, 128, 384, 8
        $region72: #{tpu_custom_call.1} parent=39 // pred_fallthru
          _
        // Predicated region
        $region73: #{tpu_custom_call.1} parent=39 // pred_check
          %p1281 = pneg %p236
        $region74: #{tpu_custom_call.1} parent=39 // pred_check_branch
          %1283 = sbr.rel (%p1281) target = $region76
        $region75: #{tpu_custom_call.1} parent=39 // pred_region
          %s1285 = ssub.s32 128, 128
          %1286 = vsyncadd %s1259, %s1285
          %s1287 = smul.addr %s36, 3
          %s1288 = sadd.s32 %s37, %s1287
          %s1289 = smul.addr %s1288, 128
          %s1290 = scalar_lea.hbm %s6, %s1289
          %s1292 = sshll.u32 %s1262, 4
          %s1293 = int_to_ptr.vmem [resolvable:$true] %s1292
          %1295 = dma.vmem_to_hbm [thread:$0]  %s1293, 128, %s1290, %s1259
        $region76: #{tpu_custom_call.1} parent=39 // pred_fallthru
          _
      $region40: #{tpu_custom_call.1} parent=5 // pred_fallthru
        _
      %p1296 = scmp.le.s32.totalorder 2, %s26
      // Predicated region
      $region77: #{tpu_custom_call.1} parent=5 // pred_check
        %p1297 = pneg %p1296
      $region78: #{tpu_custom_call.1} parent=5 // pred_check_branch
        %1299 = sbr.rel (%p1297) target = $region80
      $region79: #{tpu_custom_call.1} parent=5 // pred_region
        %s1300 = ssub.s32 %s26, 2
        // Predicated region
        $region81: #{tpu_custom_call.1} parent=79 // pred_check
          %p1301 = pneg %p214
        $region82: #{tpu_custom_call.1} parent=79 // pred_check_branch
          %1303 = sbr.rel (%p1301) target = $region84
        $region83: #{tpu_custom_call.1} parent=79 // pred_region
          %s1304 = sand.u32 %s199, 1
          %s1305 = scalar_lea.sflag [#allocation6], %s1304
          %s1306 = sand.u32 %s199, 1
          %s1307 = smul.addr %s1306, 32
          %s1308 = scalar_lea.vmem [#allocation12], %s1307
          %1309 = dma.done %s1305, 512
        $region84: #{tpu_custom_call.1} parent=79 // pred_fallthru
          _
        // Predicated region
        $region85: #{tpu_custom_call.1} parent=79 // pred_check
          %p1310 = pneg %p242
        $region86: #{tpu_custom_call.1} parent=79 // pred_check_branch
          %1312 = sbr.rel (%p1310) target = $region88
        $region87: #{tpu_custom_call.1} parent=79 // pred_region
          %s1313 = sand.u32 %s227, 1
          %s1314 = scalar_lea.sflag [#allocation14], %s1313
          %s1315 = sand.u32 %s227, 1
          %s1316 = smul.addr %s1315, 8
          %s1317 = scalar_lea.vmem [#allocation13], %s1316
          %1318 = dma.done %s1314, 128
        $region88: #{tpu_custom_call.1} parent=79 // pred_fallthru
          _
      $region80: #{tpu_custom_call.1} parent=5 // pred_fallthru
        _
    $region6: #{tpu_custom_call.1} parent=1 // loop_footer
      %s30 = sadd.s32 1, %s26
    $region7: #{tpu_custom_call.1} parent=1 // loop_footer_branch
      %25 = sbr.rel target = $region3
    $region8: #{tpu_custom_call.1} parent=1 // loop_exit
      _
    %1319 = vsyncpa [#allocation5], 1
    %s1320 = scalar_lea.sflag [#allocation5], 1
    %1321 = vsyncpa %s1320, 1
    %1322 = vsyncpa [#allocation8], 1
    %s1323 = scalar_lea.sflag [#allocation8], 1
    %1324 = vsyncpa %s1323, 1
    %1325 = vsyncpa [#allocation11], 1
    %s1326 = scalar_lea.sflag [#allocation11], 1
    %1327 = vsyncpa %s1326, 1
    %1328 = vsyncpa [#allocation6], 1
    %s1329 = scalar_lea.sflag [#allocation6], 1
    %1330 = vsyncpa %s1329, 1
    %1331 = vsyncpa [#allocation14], 1
    %s1332 = scalar_lea.sflag [#allocation14], 1
    %1333 = vsyncpa %s1332, 1

</llo_original>
